<compile_context>
chip_gen: v6e
topology: v6e:2x2x1
jax: 0.10.0
libtpu: 0.0.40
codegen_flags: <defaults>
</compile_context>

<pallas_src>
import functools

import jax
import jax.numpy as jnp
import numpy as np
from jax.experimental import pallas as pl
from jax.experimental.pallas import tpu as pltpu

LN_EPS = 1e-5                      # torch.nn.LayerNorm default
_INV_SQRT2 = 0.7071067811865476    # for exact (erf) GELU


def _layernorm(x, gamma, beta):
    mean = jnp.mean(x, axis=-1, keepdims=True)
    var = jnp.mean(jnp.square(x - mean), axis=-1, keepdims=True)
    return (x - mean) * jax.lax.rsqrt(var + LN_EPS) * gamma + beta


def _gelu(x):
    return 0.5 * x * (1.0 + jax.lax.erf(x * jnp.float32(_INV_SQRT2)))


# ---------------------------------------------------------------------------
# Single fused kernel: one grid step == one full transformer layer
# (PreNorm-Attention + residual, then PreNorm-FeedForward + residual).
# The running activation lives in a VMEM scratch across the depth grid.
# ---------------------------------------------------------------------------
def _transformer_kernel(x_ref, bias_ref,
                        ln1_g_ref, ln1_b_ref,
                        wq_ref, wk_ref, wv_ref, wo_ref, bo_ref,
                        ln2_g_ref, ln2_b_ref,
                        w1_ref, b1_ref, w2_ref, b2_ref,
                        o_ref, acc_ref, *, heads):
    layer = pl.program_id(0)

    @pl.when(layer == 0)
    def _init():
        acc_ref[...] = x_ref[...]

    x0 = acc_ref[...]                      # (BN, D) f32, resident activation
    bias = bias_ref[...]                   # (BN, BN) additive block-diag mask

    # ------------------- PreNorm(Attention) + residual -------------------
    xn = _layernorm(x0, ln1_g_ref[0], ln1_b_ref[0])      # f32
    xn_b = xn.astype(jnp.bfloat16)                       # bf16 MXU input

    attn_out = jnp.zeros_like(x0)                        # f32 accumulator
    for h in range(heads):                               # static unroll; leading-axis
        wq = wq_ref[0, h]                                # (D, dh) bf16, scale folded
        wk = wk_ref[0, h]
        wv = wv_ref[0, h]
        wo = wo_ref[0, h]                                # (dh, D) bf16

        qh = jnp.dot(xn_b, wq, preferred_element_type=jnp.float32).astype(jnp.bfloat16)
        kh = jnp.dot(xn_b, wk, preferred_element_type=jnp.float32).astype(jnp.bfloat16)
        vh = jnp.dot(xn_b, wv, preferred_element_type=jnp.float32).astype(jnp.bfloat16)

        # scores for all B*N rows at once; cross-batch pairs killed by `bias`
        s = jax.lax.dot_general(qh, kh, (((1,), (1,)), ((), ())),
                                preferred_element_type=jnp.float32)
        s = s + bias
        s = s - jnp.max(s, axis=-1, keepdims=True)
        p = jnp.exp(s)
        p = p * pl.reciprocal(jnp.sum(p, axis=-1, keepdims=True), approx=True)

        oh = jnp.dot(p.astype(jnp.bfloat16), vh,
                     preferred_element_type=jnp.float32)
        # per-head output projection, summed over heads == concat + Wo matmul
        attn_out = attn_out + jnp.dot(oh.astype(jnp.bfloat16), wo,
                                      preferred_element_type=jnp.float32)

    x1 = attn_out + bo_ref[0] + x0                       # residual

    # ----------------- PreNorm(FeedForward) + residual -------------------
    yn = _layernorm(x1, ln2_g_ref[0], ln2_b_ref[0])
    hid = jnp.dot(yn.astype(jnp.bfloat16), w1_ref[0],
                  preferred_element_type=jnp.float32) + b1_ref[0]
    hid = _gelu(hid)                                     # exact erf GELU, f32
    y = jnp.dot(hid.astype(jnp.bfloat16), w2_ref[0],
                preferred_element_type=jnp.float32) + b2_ref[0]
    x2 = y + x1                                          # residual

    acc_ref[...] = x2

    @pl.when(layer == pl.num_programs(0) - 1)
    def _finish():
        o_ref[...] = x2.astype(o_ref.dtype)


# ---------------------------------------------------------------------------
# pallas_call wrapper: whole transformer in one call, grid over depth.
# ---------------------------------------------------------------------------
def transformer_forward(x, params, *, heads, dim_head):
    B, N, D = x.shape
    BN = B * N
    depth = params["wq"].shape[0]
    mlp_dim = params["w1"].shape[-1]

    x2d = x.reshape(BN, D).astype(jnp.float32)

    # additive block-diagonal bias: 0 for same-batch pairs, -1e30 otherwise
    batch_ids = jnp.arange(BN, dtype=jnp.int32) // N
    bias = jnp.where(batch_ids[:, None] == batch_ids[None, :],
                     jnp.float32(0.0), jnp.float32(-1e30))

    kernel = functools.partial(_transformer_kernel, heads=heads)

    grid_spec = pltpu.PrefetchScalarGridSpec(
        num_scalar_prefetch=0,
        grid=(depth,),
        in_specs=[
            pl.BlockSpec((BN, D), lambda l: (0, 0)),                       # x (resident)
            pl.BlockSpec((BN, BN), lambda l: (0, 0)),                      # attn bias (resident)
            pl.BlockSpec((1, 1, D), lambda l: (l, 0, 0)),                  # ln1 gamma
            pl.BlockSpec((1, 1, D), lambda l: (l, 0, 0)),                  # ln1 beta
            pl.BlockSpec((1, heads, D, dim_head), lambda l: (l, 0, 0, 0)),  # Wq (scaled)
            pl.BlockSpec((1, heads, D, dim_head), lambda l: (l, 0, 0, 0)),  # Wk
            pl.BlockSpec((1, heads, D, dim_head), lambda l: (l, 0, 0, 0)),  # Wv
            pl.BlockSpec((1, heads, dim_head, D), lambda l: (l, 0, 0, 0)),  # Wo
            pl.BlockSpec((1, 1, D), lambda l: (l, 0, 0)),                  # bo
            pl.BlockSpec((1, 1, D), lambda l: (l, 0, 0)),                  # ln2 gamma
            pl.BlockSpec((1, 1, D), lambda l: (l, 0, 0)),                  # ln2 beta
            pl.BlockSpec((1, D, mlp_dim), lambda l: (l, 0, 0)),            # W1
            pl.BlockSpec((1, 1, mlp_dim), lambda l: (l, 0, 0)),            # b1
            pl.BlockSpec((1, mlp_dim, D), lambda l: (l, 0, 0)),            # W2
            pl.BlockSpec((1, 1, D), lambda l: (l, 0, 0)),                  # b2
        ],
        out_specs=pl.BlockSpec((BN, D), lambda l: (0, 0)),
        scratch_shapes=[pltpu.VMEM((BN, D), jnp.float32)],
    )

    out2d = pl.pallas_call(
        kernel,
        out_shape=jax.ShapeDtypeStruct((BN, D), jnp.float32),
        grid_spec=grid_spec,
        compiler_params=pltpu.CompilerParams(
            dimension_semantics=("arbitrary",)),   # depth is a carried loop
    )(x2d, bias,
      params["ln1_g"], params["ln1_b"],
      params["wq"], params["wk"], params["wv"], params["wo"], params["bo"],
      params["ln2_g"], params["ln2_b"],
      params["w1"], params["b1"], params["w2"], params["b2"])

    return out2d.reshape(B, N, D).astype(x.dtype)


# ---------------------------------------------------------------------------
# Parameter construction: deterministic synthetic weights, stacked over depth,
# pre-split per head, softmax scale folded into Wq, matmul weights in bf16.
# ---------------------------------------------------------------------------
def init_transformer_params(key, dim, depth, heads, dim_head, mlp_dim):
    inner = heads * dim_head
    scale = dim_head ** (-0.5)
    ks = jax.random.split(key, 6)

    wqkv = jax.random.normal(ks[0], (depth, dim, 3 * inner), jnp.float32) * 0.05
    wq = wqkv[:, :, 0 * inner:1 * inner] * scale     # fold softmax scale into Wq
    wk = wqkv[:, :, 1 * inner:2 * inner]
    wv = wqkv[:, :, 2 * inner:3 * inner]

    def split_heads(w):  # (depth, dim, inner) -> (depth, heads, dim, dim_head)
        return w.reshape(depth, dim, heads, dim_head).transpose(0, 2, 1, 3)

    wo = jax.random.normal(ks[1], (depth, inner, dim), jnp.float32) * 0.05

    return dict(
        ln1_g=jnp.ones((depth, 1, dim), jnp.float32),
        ln1_b=jnp.zeros((depth, 1, dim), jnp.float32),
        wq=split_heads(wq).astype(jnp.bfloat16),
        wk=split_heads(wk).astype(jnp.bfloat16),
        wv=split_heads(wv).astype(jnp.bfloat16),
        wo=wo.reshape(depth, heads, dim_head, dim).astype(jnp.bfloat16),
        bo=jax.random.normal(ks[2], (depth, 1, dim), jnp.float32) * 0.01,
        ln2_g=jnp.ones((depth, 1, dim), jnp.float32),
        ln2_b=jnp.zeros((depth, 1, dim), jnp.float32),
        w1=(jax.random.normal(ks[3], (depth, dim, mlp_dim), jnp.float32) * 0.05
            ).astype(jnp.bfloat16),
        b1=jax.random.normal(ks[4], (depth, 1, mlp_dim), jnp.float32) * 0.01,
        w2=(jax.random.normal(ks[5], (depth, mlp_dim, dim), jnp.float32) * 0.05
            ).astype(jnp.bfloat16),
        b2=jnp.zeros((depth, 1, dim), jnp.float32),
    )


# ---------------------------------------------------------------------------
# Pure-JAX reference (same prepared params, f32 math) for a sanity check.
# ---------------------------------------------------------------------------
def _reference_forward(x, params, *, heads, dim_head):
    f32 = jnp.float32
    depth = params["wq"].shape[0]
    out = x.astype(f32)
    for l in range(depth):
        # attention block
        xn = _layernorm(out, params["ln1_g"][l, 0], params["ln1_b"][l, 0])
        wq = params["wq"][l].astype(f32)   # (heads, D, dh), scale already folded
        wk = params["wk"][l].astype(f32)
        wv = params["wv"][l].astype(f32)
        wo = params["wo"][l].astype(f32)   # (heads, dh, D)
        q = jnp.einsum("bnd,hdk->bhnk", xn, wq)
        k = jnp.einsum("bnd,hdk->bhnk", xn, wk)
        v = jnp.einsum("bnd,hdk->bhnk", xn, wv)
        s = jnp.einsum("bhnk,bhmk->bhnm", q, k)
        p = jax.nn.softmax(s, axis=-1)
        o = jnp.einsum("bhnm,bhmk->bhnk", p, v)
        proj = jnp.einsum("bhnk,hkd->bnd", o, wo) + params["bo"][l, 0]
        out = proj + out
        # feed-forward block
        yn = _layernorm(out, params["ln2_g"][l, 0], params["ln2_b"][l, 0])
        hid = yn @ params["w1"][l].astype(f32) + params["b1"][l, 0]
        hid = _gelu(hid)
        y = hid @ params["w2"][l].astype(f32) + params["b2"][l, 0]
        out = y + out
    return out


if __name__ == "__main__":
    # Small shapes consistent with the module's forward (x: (batch, seq, dim)).
    B, N = 2, 8
    DIM, DEPTH, HEADS, DIM_HEAD, MLP_DIM = 32, 2, 4, 16, 64

    key = jax.random.PRNGKey(0)
    kx, kp = jax.random.split(key)
    x = jax.random.normal(kx, (B, N, DIM), jnp.float32)
    params = init_transformer_params(kp, DIM, DEPTH, HEADS, DIM_HEAD, MLP_DIM)

    fwd = jax.jit(functools.partial(transformer_forward,
                                    heads=HEADS, dim_head=DIM_HEAD))
    out = jax.block_until_ready(fwd(x, params))

    ref = jax.block_until_ready(
        _reference_forward(x, params, heads=HEADS, dim_head=DIM_HEAD))

    assert out.shape == (B, N, DIM) and out.dtype == jnp.float32
    max_err = float(jnp.max(jnp.abs(out - ref.astype(out.dtype))))
    assert np.isfinite(max_err) and max_err < 5e-2, f"max abs err {max_err}"
    print("KERNEL_OK")
</pallas_src>

<mosaic_0001>
module attributes {stable_mosaic.version = 11 : i64} {
  func.func @_transformer_kernel(%arg0: i32, %arg1: memref<16x32xf32, #tpu.memory_space<vmem>>, %arg2: memref<16x16xf32, #tpu.memory_space<vmem>>, %arg3: memref<1x1x32xf32, #tpu.memory_space<vmem>>, %arg4: memref<1x1x32xf32, #tpu.memory_space<vmem>>, %arg5: memref<1x4x32x16xbf16, #tpu.memory_space<vmem>>, %arg6: memref<1x4x32x16xbf16, #tpu.memory_space<vmem>>, %arg7: memref<1x4x32x16xbf16, #tpu.memory_space<vmem>>, %arg8: memref<1x4x16x32xbf16, #tpu.memory_space<vmem>>, %arg9: memref<1x1x32xf32, #tpu.memory_space<vmem>>, %arg10: memref<1x1x32xf32, #tpu.memory_space<vmem>>, %arg11: memref<1x1x32xf32, #tpu.memory_space<vmem>>, %arg12: memref<1x32x64xbf16, #tpu.memory_space<vmem>>, %arg13: memref<1x1x64xf32, #tpu.memory_space<vmem>>, %arg14: memref<1x64x32xbf16, #tpu.memory_space<vmem>>, %arg15: memref<1x1x32xf32, #tpu.memory_space<vmem>>, %arg16: memref<16x32xf32, #tpu.memory_space<vmem>>, %arg17: memref<16x32xf32, #tpu.memory_space<vmem>>) attributes {dimension_semantics = [#tpu.dimension_semantics<arbitrary>], iteration_bounds = array<i64: 2>, scalar_prefetch = 0 : i64, scratch_operands = 1 : i64, tpu.core_type = #tpu.core_type<tc>, window_params = [{pipeline_mode = #tpu.pipeline_mode<synchronous>, transform_indices = @transform_0, window_bounds = array<i64: 16, 32>}, {pipeline_mode = #tpu.pipeline_mode<synchronous>, transform_indices = @transform_1, window_bounds = array<i64: 16, 16>}, {transform_indices = @transform_2, window_bounds = array<i64: 1, 1, 32>}, {transform_indices = @transform_3, window_bounds = array<i64: 1, 1, 32>}, {transform_indices = @transform_4, window_bounds = array<i64: 1, 4, 32, 16>}, {transform_indices = @transform_5, window_bounds = array<i64: 1, 4, 32, 16>}, {transform_indices = @transform_6, window_bounds = array<i64: 1, 4, 32, 16>}, {transform_indices = @transform_7, window_bounds = array<i64: 1, 4, 16, 32>}, {transform_indices = @transform_8, window_bounds = array<i64: 1, 1, 32>}, {transform_indices = @transform_9, window_bounds = array<i64: 1, 1, 32>}, {transform_indices = @transform_10, window_bounds = array<i64: 1, 1, 32>}, {transform_indices = @transform_11, window_bounds = array<i64: 1, 32, 64>}, {transform_indices = @transform_12, window_bounds = array<i64: 1, 1, 64>}, {transform_indices = @transform_13, window_bounds = array<i64: 1, 64, 32>}, {transform_indices = @transform_14, window_bounds = array<i64: 1, 1, 32>}, {pipeline_mode = #tpu.pipeline_mode<synchronous>, transform_indices = @transform_15, window_bounds = array<i64: 16, 32>}]} {
    %c0_i32 = arith.constant 0 : i32
    %0 = arith.cmpi eq, %arg0, %c0_i32 : i32
    %1 = arith.extui %0 : i1 to i32
    %c0_i32_0 = arith.constant 0 : i32
    %2 = arith.cmpi ne, %1, %c0_i32_0 : i32
    scf.if %2 {
      %c0_142 = arith.constant 0 : index
      %c0_143 = arith.constant 0 : index
      %217 = vector.load %arg1[%c0_142, %c0_143] : memref<16x32xf32, #tpu.memory_space<vmem>>, vector<16x32xf32>
      %c0_144 = arith.constant 0 : index
      %c0_145 = arith.constant 0 : index
      %218 = vector.load %arg17[%c0_144, %c0_145] : memref<16x32xf32, #tpu.memory_space<vmem>>, vector<16x32xf32>
      tpu.vector_store %arg17[%c0_144, %c0_145], %217 {strides = array<i32>} : memref<16x32xf32, #tpu.memory_space<vmem>>, vector<16x32xf32>,
    } else {
    }
    %c0 = arith.constant 0 : index
    %c0_1 = arith.constant 0 : index
    %3 = vector.load %arg17[%c0, %c0_1] : memref<16x32xf32, #tpu.memory_space<vmem>>, vector<16x32xf32>
    %c0_2 = arith.constant 0 : index
    %c0_3 = arith.constant 0 : index
    %4 = vector.load %arg2[%c0_2, %c0_3] : memref<16x16xf32, #tpu.memory_space<vmem>>, vector<16x16xf32>
    %c0_4 = arith.constant 0 : index
    %c0_5 = arith.constant 0 : index
    %c0_6 = arith.constant 0 : index
    %5 = vector.load %arg3[%c0_4, %c0_5, %c0_6] : memref<1x1x32xf32, #tpu.memory_space<vmem>>, vector<1x1x32xf32>
    %6 = vector.shape_cast %5 : vector<1x1x32xf32> to vector<1x32xf32>
    %c0_7 = arith.constant 0 : index
    %c0_8 = arith.constant 0 : index
    %c0_9 = arith.constant 0 : index
    %7 = vector.load %arg4[%c0_7, %c0_8, %c0_9] : memref<1x1x32xf32, #tpu.memory_space<vmem>>, vector<1x1x32xf32>
    %8 = vector.shape_cast %7 : vector<1x1x32xf32> to vector<1x32xf32>
    %cst = arith.constant dense<0.000000e+00> : vector<16xf32>
    %9 = vector.multi_reduction <add>, %3, %cst [1] : vector<16x32xf32> to vector<16xf32>
    %10 = vector.shape_cast %9 : vector<16xf32> to vector<16x1xf32>
    %cst_10 = arith.constant 3.200000e+01 : f32
    %11 = vector.broadcast %cst_10 : f32 to vector<16x1xf32>
    %12 = arith.divf %10, %11 : vector<16x1xf32>
    %13 = vector.broadcast %12 : vector<16x1xf32> to vector<16x32xf32>
    %14 = arith.subf %3, %13 : vector<16x32xf32>
    %15 = arith.mulf %14, %14 : vector<16x32xf32>
    %cst_11 = arith.constant dense<0.000000e+00> : vector<16xf32>
    %16 = vector.multi_reduction <add>, %15, %cst_11 [1] : vector<16x32xf32> to vector<16xf32>
    %17 = vector.shape_cast %16 : vector<16xf32> to vector<16x1xf32>
    %cst_12 = arith.constant 3.200000e+01 : f32
    %18 = vector.broadcast %cst_12 : f32 to vector<16x1xf32>
    %19 = arith.divf %17, %18 : vector<16x1xf32>
    %20 = vector.broadcast %12 : vector<16x1xf32> to vector<16x32xf32>
    %21 = arith.subf %3, %20 : vector<16x32xf32>
    %cst_13 = arith.constant 9.99999974E-6 : f32
    %22 = vector.broadcast %cst_13 : f32 to vector<16x1xf32>
    %23 = arith.addf %19, %22 : vector<16x1xf32>
    %24 = math.rsqrt %23 : vector<16x1xf32>
    %25 = vector.broadcast %24 : vector<16x1xf32> to vector<16x32xf32>
    %26 = arith.mulf %21, %25 : vector<16x32xf32>
    %27 = vector.broadcast %6 : vector<1x32xf32> to vector<16x32xf32>
    %28 = arith.mulf %26, %27 : vector<16x32xf32>
    %29 = vector.broadcast %8 : vector<1x32xf32> to vector<16x32xf32>
    %30 = arith.addf %28, %29 : vector<16x32xf32>
    %31 = arith.truncf %30 : vector<16x32xf32> to vector<16x32xbf16>
    %cst_14 = arith.constant 0.000000e+00 : f32
    %32 = vector.broadcast %cst_14 : f32 to vector<16x32xf32>
    %c0_15 = arith.constant 0 : index
    %c0_16 = arith.constant 0 : index
    %c0_17 = arith.constant 0 : index
    %c0_18 = arith.constant 0 : index
    %33 = vector.load %arg5[%c0_15, %c0_16, %c0_17, %c0_18] : memref<1x4x32x16xbf16, #tpu.memory_space<vmem>>, vector<1x1x32x16xbf16>
    %34 = vector.shape_cast %33 : vector<1x1x32x16xbf16> to vector<32x16xbf16>
    %c0_19 = arith.constant 0 : index
    %c0_20 = arith.constant 0 : index
    %c0_21 = arith.constant 0 : index
    %c0_22 = arith.constant 0 : index
    %35 = vector.load %arg6[%c0_19, %c0_20, %c0_21, %c0_22] : memref<1x4x32x16xbf16, #tpu.memory_space<vmem>>, vector<1x1x32x16xbf16>
    %36 = vector.shape_cast %35 : vector<1x1x32x16xbf16> to vector<32x16xbf16>
    %c0_23 = arith.constant 0 : index
    %c0_24 = arith.constant 0 : index
    %c0_25 = arith.constant 0 : index
    %c0_26 = arith.constant 0 : index
    %37 = vector.load %arg7[%c0_23, %c0_24, %c0_25, %c0_26] : memref<1x4x32x16xbf16, #tpu.memory_space<vmem>>, vector<1x1x32x16xbf16>
    %38 = vector.shape_cast %37 : vector<1x1x32x16xbf16> to vector<32x16xbf16>
    %c0_27 = arith.constant 0 : index
    %c0_28 = arith.constant 0 : index
    %c0_29 = arith.constant 0 : index
    %c0_30 = arith.constant 0 : index
    %39 = vector.load %arg8[%c0_27, %c0_28, %c0_29, %c0_30] : memref<1x4x16x32xbf16, #tpu.memory_space<vmem>>, vector<1x1x16x32xbf16>
    %40 = vector.shape_cast %39 : vector<1x1x16x32xbf16> to vector<16x32xbf16>
    %cst_31 = arith.constant dense<0.000000e+00> : vector<16x16xf32>
    %41 = tpu.matmul %31, %34, %cst_31 {dimension_numbers = #tpu.dot_dimension_numbers<[1], [0], [0], [1], [0, 0, 1, 1], [], []>} : vector<16x32xbf16>, vector<32x16xbf16>, vector<16x16xf32> -> vector<16x16xf32>
    %42 = arith.truncf %41 : vector<16x16xf32> to vector<16x16xbf16>
    %cst_32 = arith.constant dense<0.000000e+00> : vector<16x16xf32>
    %43 = tpu.matmul %31, %36, %cst_32 {dimension_numbers = #tpu.dot_dimension_numbers<[1], [0], [0], [1], [0, 0, 1, 1], [], []>} : vector<16x32xbf16>, vector<32x16xbf16>, vector<16x16xf32> -> vector<16x16xf32>
    %44 = arith.truncf %43 : vector<16x16xf32> to vector<16x16xbf16>
    %cst_33 = arith.constant dense<0.000000e+00> : vector<16x16xf32>
    %45 = tpu.matmul %31, %38, %cst_33 {dimension_numbers = #tpu.dot_dimension_numbers<[1], [0], [0], [1], [0, 0, 1, 1], [], []>} : vector<16x32xbf16>, vector<32x16xbf16>, vector<16x16xf32> -> vector<16x16xf32>
    %46 = arith.truncf %45 : vector<16x16xf32> to vector<16x16xbf16>
    %cst_34 = arith.constant dense<0.000000e+00> : vector<16x16xf32>
    %47 = tpu.matmul %42, %44, %cst_34 {dimension_numbers = #tpu.dot_dimension_numbers<[1], [1], [0], [0], [0, 0, 1, 0], [], []>} : vector<16x16xbf16>, vector<16x16xbf16>, vector<16x16xf32> -> vector<16x16xf32>
    %48 = arith.addf %47, %4 : vector<16x16xf32>
    %cst_35 = arith.constant dense<0xFF800000> : vector<16xf32>
    %49 = vector.multi_reduction <maximumf>, %48, %cst_35 [1] : vector<16x16xf32> to vector<16xf32>
    %50 = vector.shape_cast %49 : vector<16xf32> to vector<16x1xf32>
    %51 = vector.broadcast %50 : vector<16x1xf32> to vector<16x16xf32>
    %52 = arith.subf %48, %51 : vector<16x16xf32>
    %53 = math.exp %52 : vector<16x16xf32>
    %cst_36 = arith.constant dense<0.000000e+00> : vector<16xf32>
    %54 = vector.multi_reduction <add>, %53, %cst_36 [1] : vector<16x16xf32> to vector<16xf32>
    %55 = vector.shape_cast %54 : vector<16xf32> to vector<16x1xf32>
    %56 = tpu.reciprocal %55 {approx = true} : vector<16x1xf32> -> vector<16x1xf32>
    %57 = vector.broadcast %56 : vector<16x1xf32> to vector<16x16xf32>
    %58 = arith.mulf %53, %57 : vector<16x16xf32>
    %59 = arith.truncf %58 : vector<16x16xf32> to vector<16x16xbf16>
    %cst_37 = arith.constant dense<0.000000e+00> : vector<16x16xf32>
    %60 = tpu.matmul %59, %46, %cst_37 {dimension_numbers = #tpu.dot_dimension_numbers<[1], [0], [0], [1], [0, 0, 1, 1], [], []>} : vector<16x16xbf16>, vector<16x16xbf16>, vector<16x16xf32> -> vector<16x16xf32>
    %61 = arith.truncf %60 : vector<16x16xf32> to vector<16x16xbf16>
    %cst_38 = arith.constant dense<0.000000e+00> : vector<16x32xf32>
    %62 = tpu.matmul %61, %40, %cst_38 {dimension_numbers = #tpu.dot_dimension_numbers<[1], [0], [0], [1], [0, 0, 1, 1], [], []>} : vector<16x16xbf16>, vector<16x32xbf16>, vector<16x32xf32> -> vector<16x32xf32>
    %63 = arith.addf %32, %62 : vector<16x32xf32>
    %c0_39 = arith.constant 0 : index
    %c1 = arith.constant 1 : index
    %c0_40 = arith.constant 0 : index
    %c0_41 = arith.constant 0 : index
    %64 = vector.load %arg5[%c0_39, %c1, %c0_40, %c0_41] : memref<1x4x32x16xbf16, #tpu.memory_space<vmem>>, vector<1x1x32x16xbf16>
    %65 = vector.shape_cast %64 : vector<1x1x32x16xbf16> to vector<32x16xbf16>
    %c0_42 = arith.constant 0 : index
    %c1_43 = arith.constant 1 : index
    %c0_44 = arith.constant 0 : index
    %c0_45 = arith.constant 0 : index
    %66 = vector.load %arg6[%c0_42, %c1_43, %c0_44, %c0_45] : memref<1x4x32x16xbf16, #tpu.memory_space<vmem>>, vector<1x1x32x16xbf16>
    %67 = vector.shape_cast %66 : vector<1x1x32x16xbf16> to vector<32x16xbf16>
    %c0_46 = arith.constant 0 : index
    %c1_47 = arith.constant 1 : index
    %c0_48 = arith.constant 0 : index
    %c0_49 = arith.constant 0 : index
    %68 = vector.load %arg7[%c0_46, %c1_47, %c0_48, %c0_49] : memref<1x4x32x16xbf16, #tpu.memory_space<vmem>>, vector<1x1x32x16xbf16>
    %69 = vector.shape_cast %68 : vector<1x1x32x16xbf16> to vector<32x16xbf16>
    %c0_50 = arith.constant 0 : index
    %c1_51 = arith.constant 1 : index
    %c0_52 = arith.constant 0 : index
    %c0_53 = arith.constant 0 : index
    %70 = vector.load %arg8[%c0_50, %c1_51, %c0_52, %c0_53] : memref<1x4x16x32xbf16, #tpu.memory_space<vmem>>, vector<1x1x16x32xbf16>
    %71 = vector.shape_cast %70 : vector<1x1x16x32xbf16> to vector<16x32xbf16>
    %cst_54 = arith.constant dense<0.000000e+00> : vector<16x16xf32>
    %72 = tpu.matmul %31, %65, %cst_54 {dimension_numbers = #tpu.dot_dimension_numbers<[1], [0], [0], [1], [0, 0, 1, 1], [], []>} : vector<16x32xbf16>, vector<32x16xbf16>, vector<16x16xf32> -> vector<16x16xf32>
    %73 = arith.truncf %72 : vector<16x16xf32> to vector<16x16xbf16>
    %cst_55 = arith.constant dense<0.000000e+00> : vector<16x16xf32>
    %74 = tpu.matmul %31, %67, %cst_55 {dimension_numbers = #tpu.dot_dimension_numbers<[1], [0], [0], [1], [0, 0, 1, 1], [], []>} : vector<16x32xbf16>, vector<32x16xbf16>, vector<16x16xf32> -> vector<16x16xf32>
    %75 = arith.truncf %74 : vector<16x16xf32> to vector<16x16xbf16>
    %cst_56 = arith.constant dense<0.000000e+00> : vector<16x16xf32>
    %76 = tpu.matmul %31, %69, %cst_56 {dimension_numbers = #tpu.dot_dimension_numbers<[1], [0], [0], [1], [0, 0, 1, 1], [], []>} : vector<16x32xbf16>, vector<32x16xbf16>, vector<16x16xf32> -> vector<16x16xf32>
    %77 = arith.truncf %76 : vector<16x16xf32> to vector<16x16xbf16>
    %cst_57 = arith.constant dense<0.000000e+00> : vector<16x16xf32>
    %78 = tpu.matmul %73, %75, %cst_57 {dimension_numbers = #tpu.dot_dimension_numbers<[1], [1], [0], [0], [0, 0, 1, 0], [], []>} : vector<16x16xbf16>, vector<16x16xbf16>, vector<16x16xf32> -> vector<16x16xf32>
    %79 = arith.addf %78, %4 : vector<16x16xf32>
    %cst_58 = arith.constant dense<0xFF800000> : vector<16xf32>
    %80 = vector.multi_reduction <maximumf>, %79, %cst_58 [1] : vector<16x16xf32> to vector<16xf32>
    %81 = vector.shape_cast %80 : vector<16xf32> to vector<16x1xf32>
    %82 = vector.broadcast %81 : vector<16x1xf32> to vector<16x16xf32>
    %83 = arith.subf %79, %82 : vector<16x16xf32>
    %84 = math.exp %83 : vector<16x16xf32>
    %cst_59 = arith.constant dense<0.000000e+00> : vector<16xf32>
    %85 = vector.multi_reduction <add>, %84, %cst_59 [1] : vector<16x16xf32> to vector<16xf32>
    %86 = vector.shape_cast %85 : vector<16xf32> to vector<16x1xf32>
    %87 = tpu.reciprocal %86 {approx = true} : vector<16x1xf32> -> vector<16x1xf32>
    %88 = vector.broadcast %87 : vector<16x1xf32> to vector<16x16xf32>
    %89 = arith.mulf %84, %88 : vector<16x16xf32>
    %90 = arith.truncf %89 : vector<16x16xf32> to vector<16x16xbf16>
    %cst_60 = arith.constant dense<0.000000e+00> : vector<16x16xf32>
    %91 = tpu.matmul %90, %77, %cst_60 {dimension_numbers = #tpu.dot_dimension_numbers<[1], [0], [0], [1], [0, 0, 1, 1], [], []>} : vector<16x16xbf16>, vector<16x16xbf16>, vector<16x16xf32> -> vector<16x16xf32>
    %92 = arith.truncf %91 : vector<16x16xf32> to vector<16x16xbf16>
    %cst_61 = arith.constant dense<0.000000e+00> : vector<16x32xf32>
    %93 = tpu.matmul %92, %71, %cst_61 {dimension_numbers = #tpu.dot_dimension_numbers<[1], [0], [0], [1], [0, 0, 1, 1], [], []>} : vector<16x16xbf16>, vector<16x32xbf16>, vector<16x32xf32> -> vector<16x32xf32>
    %94 = arith.addf %63, %93 : vector<16x32xf32>
    %c0_62 = arith.constant 0 : index
    %c2 = arith.constant 2 : index
    %c0_63 = arith.constant 0 : index
    %c0_64 = arith.constant 0 : index
    %95 = vector.load %arg5[%c0_62, %c2, %c0_63, %c0_64] : memref<1x4x32x16xbf16, #tpu.memory_space<vmem>>, vector<1x1x32x16xbf16>
    %96 = vector.shape_cast %95 : vector<1x1x32x16xbf16> to vector<32x16xbf16>
    %c0_65 = arith.constant 0 : index
    %c2_66 = arith.constant 2 : index
    %c0_67 = arith.constant 0 : index
    %c0_68 = arith.constant 0 : index
    %97 = vector.load %arg6[%c0_65, %c2_66, %c0_67, %c0_68] : memref<1x4x32x16xbf16, #tpu.memory_space<vmem>>, vector<1x1x32x16xbf16>
    %98 = vector.shape_cast %97 : vector<1x1x32x16xbf16> to vector<32x16xbf16>
    %c0_69 = arith.constant 0 : index
    %c2_70 = arith.constant 2 : index
    %c0_71 = arith.constant 0 : index
    %c0_72 = arith.constant 0 : index
    %99 = vector.load %arg7[%c0_69, %c2_70, %c0_71, %c0_72] : memref<1x4x32x16xbf16, #tpu.memory_space<vmem>>, vector<1x1x32x16xbf16>
    %100 = vector.shape_cast %99 : vector<1x1x32x16xbf16> to vector<32x16xbf16>
    %c0_73 = arith.constant 0 : index
    %c2_74 = arith.constant 2 : index
    %c0_75 = arith.constant 0 : index
    %c0_76 = arith.constant 0 : index
    %101 = vector.load %arg8[%c0_73, %c2_74, %c0_75, %c0_76] : memref<1x4x16x32xbf16, #tpu.memory_space<vmem>>, vector<1x1x16x32xbf16>
    %102 = vector.shape_cast %101 : vector<1x1x16x32xbf16> to vector<16x32xbf16>
    %cst_77 = arith.constant dense<0.000000e+00> : vector<16x16xf32>
    %103 = tpu.matmul %31, %96, %cst_77 {dimension_numbers = #tpu.dot_dimension_numbers<[1], [0], [0], [1], [0, 0, 1, 1], [], []>} : vector<16x32xbf16>, vector<32x16xbf16>, vector<16x16xf32> -> vector<16x16xf32>
    %104 = arith.truncf %103 : vector<16x16xf32> to vector<16x16xbf16>
    %cst_78 = arith.constant dense<0.000000e+00> : vector<16x16xf32>
    %105 = tpu.matmul %31, %98, %cst_78 {dimension_numbers = #tpu.dot_dimension_numbers<[1], [0], [0], [1], [0, 0, 1, 1], [], []>} : vector<16x32xbf16>, vector<32x16xbf16>, vector<16x16xf32> -> vector<16x16xf32>
    %106 = arith.truncf %105 : vector<16x16xf32> to vector<16x16xbf16>
    %cst_79 = arith.constant dense<0.000000e+00> : vector<16x16xf32>
    %107 = tpu.matmul %31, %100, %cst_79 {dimension_numbers = #tpu.dot_dimension_numbers<[1], [0], [0], [1], [0, 0, 1, 1], [], []>} : vector<16x32xbf16>, vector<32x16xbf16>, vector<16x16xf32> -> vector<16x16xf32>
    %108 = arith.truncf %107 : vector<16x16xf32> to vector<16x16xbf16>
    %cst_80 = arith.constant dense<0.000000e+00> : vector<16x16xf32>
    %109 = tpu.matmul %104, %106, %cst_80 {dimension_numbers = #tpu.dot_dimension_numbers<[1], [1], [0], [0], [0, 0, 1, 0], [], []>} : vector<16x16xbf16>, vector<16x16xbf16>, vector<16x16xf32> -> vector<16x16xf32>
    %110 = arith.addf %109, %4 : vector<16x16xf32>
    %cst_81 = arith.constant dense<0xFF800000> : vector<16xf32>
    %111 = vector.multi_reduction <maximumf>, %110, %cst_81 [1] : vector<16x16xf32> to vector<16xf32>
    %112 = vector.shape_cast %111 : vector<16xf32> to vector<16x1xf32>
    %113 = vector.broadcast %112 : vector<16x1xf32> to vector<16x16xf32>
    %114 = arith.subf %110, %113 : vector<16x16xf32>
    %115 = math.exp %114 : vector<16x16xf32>
    %cst_82 = arith.constant dense<0.000000e+00> : vector<16xf32>
    %116 = vector.multi_reduction <add>, %115, %cst_82 [1] : vector<16x16xf32> to vector<16xf32>
    %117 = vector.shape_cast %116 : vector<16xf32> to vector<16x1xf32>
    %118 = tpu.reciprocal %117 {approx = true} : vector<16x1xf32> -> vector<16x1xf32>
    %119 = vector.broadcast %118 : vector<16x1xf32> to vector<16x16xf32>
    %120 = arith.mulf %115, %119 : vector<16x16xf32>
    %121 = arith.truncf %120 : vector<16x16xf32> to vector<16x16xbf16>
    %cst_83 = arith.constant dense<0.000000e+00> : vector<16x16xf32>
    %122 = tpu.matmul %121, %108, %cst_83 {dimension_numbers = #tpu.dot_dimension_numbers<[1], [0], [0], [1], [0, 0, 1, 1], [], []>} : vector<16x16xbf16>, vector<16x16xbf16>, vector<16x16xf32> -> vector<16x16xf32>
    %123 = arith.truncf %122 : vector<16x16xf32> to vector<16x16xbf16>
    %cst_84 = arith.constant dense<0.000000e+00> : vector<16x32xf32>
    %124 = tpu.matmul %123, %102, %cst_84 {dimension_numbers = #tpu.dot_dimension_numbers<[1], [0], [0], [1], [0, 0, 1, 1], [], []>} : vector<16x16xbf16>, vector<16x32xbf16>, vector<16x32xf32> -> vector<16x32xf32>
    %125 = arith.addf %94, %124 : vector<16x32xf32>
    %c0_85 = arith.constant 0 : index
    %c3 = arith.constant 3 : index
    %c0_86 = arith.constant 0 : index
    %c0_87 = arith.constant 0 : index
    %126 = vector.load %arg5[%c0_85, %c3, %c0_86, %c0_87] : memref<1x4x32x16xbf16, #tpu.memory_space<vmem>>, vector<1x1x32x16xbf16>
    %127 = vector.shape_cast %126 : vector<1x1x32x16xbf16> to vector<32x16xbf16>
    %c0_88 = arith.constant 0 : index
    %c3_89 = arith.constant 3 : index
    %c0_90 = arith.constant 0 : index
    %c0_91 = arith.constant 0 : index
    %128 = vector.load %arg6[%c0_88, %c3_89, %c0_90, %c0_91] : memref<1x4x32x16xbf16, #tpu.memory_space<vmem>>, vector<1x1x32x16xbf16>
    %129 = vector.shape_cast %128 : vector<1x1x32x16xbf16> to vector<32x16xbf16>
    %c0_92 = arith.constant 0 : index
    %c3_93 = arith.constant 3 : index
    %c0_94 = arith.constant 0 : index
    %c0_95 = arith.constant 0 : index
    %130 = vector.load %arg7[%c0_92, %c3_93, %c0_94, %c0_95] : memref<1x4x32x16xbf16, #tpu.memory_space<vmem>>, vector<1x1x32x16xbf16>
    %131 = vector.shape_cast %130 : vector<1x1x32x16xbf16> to vector<32x16xbf16>
    %c0_96 = arith.constant 0 : index
    %c3_97 = arith.constant 3 : index
    %c0_98 = arith.constant 0 : index
    %c0_99 = arith.constant 0 : index
    %132 = vector.load %arg8[%c0_96, %c3_97, %c0_98, %c0_99] : memref<1x4x16x32xbf16, #tpu.memory_space<vmem>>, vector<1x1x16x32xbf16>
    %133 = vector.shape_cast %132 : vector<1x1x16x32xbf16> to vector<16x32xbf16>
    %cst_100 = arith.constant dense<0.000000e+00> : vector<16x16xf32>
    %134 = tpu.matmul %31, %127, %cst_100 {dimension_numbers = #tpu.dot_dimension_numbers<[1], [0], [0], [1], [0, 0, 1, 1], [], []>} : vector<16x32xbf16>, vector<32x16xbf16>, vector<16x16xf32> -> vector<16x16xf32>
    %135 = arith.truncf %134 : vector<16x16xf32> to vector<16x16xbf16>
    %cst_101 = arith.constant dense<0.000000e+00> : vector<16x16xf32>
    %136 = tpu.matmul %31, %129, %cst_101 {dimension_numbers = #tpu.dot_dimension_numbers<[1], [0], [0], [1], [0, 0, 1, 1], [], []>} : vector<16x32xbf16>, vector<32x16xbf16>, vector<16x16xf32> -> vector<16x16xf32>
    %137 = arith.truncf %136 : vector<16x16xf32> to vector<16x16xbf16>
    %cst_102 = arith.constant dense<0.000000e+00> : vector<16x16xf32>
    %138 = tpu.matmul %31, %131, %cst_102 {dimension_numbers = #tpu.dot_dimension_numbers<[1], [0], [0], [1], [0, 0, 1, 1], [], []>} : vector<16x32xbf16>, vector<32x16xbf16>, vector<16x16xf32> -> vector<16x16xf32>
    %139 = arith.truncf %138 : vector<16x16xf32> to vector<16x16xbf16>
    %cst_103 = arith.constant dense<0.000000e+00> : vector<16x16xf32>
    %140 = tpu.matmul %135, %137, %cst_103 {dimension_numbers = #tpu.dot_dimension_numbers<[1], [1], [0], [0], [0, 0, 1, 0], [], []>} : vector<16x16xbf16>, vector<16x16xbf16>, vector<16x16xf32> -> vector<16x16xf32>
    %141 = arith.addf %140, %4 : vector<16x16xf32>
    %cst_104 = arith.constant dense<0xFF800000> : vector<16xf32>
    %142 = vector.multi_reduction <maximumf>, %141, %cst_104 [1] : vector<16x16xf32> to vector<16xf32>
    %143 = vector.shape_cast %142 : vector<16xf32> to vector<16x1xf32>
    %144 = vector.broadcast %143 : vector<16x1xf32> to vector<16x16xf32>
    %145 = arith.subf %141, %144 : vector<16x16xf32>
    %146 = math.exp %145 : vector<16x16xf32>
    %cst_105 = arith.constant dense<0.000000e+00> : vector<16xf32>
    %147 = vector.multi_reduction <add>, %146, %cst_105 [1] : vector<16x16xf32> to vector<16xf32>
    %148 = vector.shape_cast %147 : vector<16xf32> to vector<16x1xf32>
    %149 = tpu.reciprocal %148 {approx = true} : vector<16x1xf32> -> vector<16x1xf32>
    %150 = vector.broadcast %149 : vector<16x1xf32> to vector<16x16xf32>
    %151 = arith.mulf %146, %150 : vector<16x16xf32>
    %152 = arith.truncf %151 : vector<16x16xf32> to vector<16x16xbf16>
    %cst_106 = arith.constant dense<0.000000e+00> : vector<16x16xf32>
    %153 = tpu.matmul %152, %139, %cst_106 {dimension_numbers = #tpu.dot_dimension_numbers<[1], [0], [0], [1], [0, 0, 1, 1], [], []>} : vector<16x16xbf16>, vector<16x16xbf16>, vector<16x16xf32> -> vector<16x16xf32>
    %154 = arith.truncf %153 : vector<16x16xf32> to vector<16x16xbf16>
    %cst_107 = arith.constant dense<0.000000e+00> : vector<16x32xf32>
    %155 = tpu.matmul %154, %133, %cst_107 {dimension_numbers = #tpu.dot_dimension_numbers<[1], [0], [0], [1], [0, 0, 1, 1], [], []>} : vector<16x16xbf16>, vector<16x32xbf16>, vector<16x32xf32> -> vector<16x32xf32>
    %156 = arith.addf %125, %155 : vector<16x32xf32>
    %c0_108 = arith.constant 0 : index
    %c0_109 = arith.constant 0 : index
    %c0_110 = arith.constant 0 : index
    %157 = vector.load %arg9[%c0_108, %c0_109, %c0_110] : memref<1x1x32xf32, #tpu.memory_space<vmem>>, vector<1x1x32xf32>
    %158 = vector.shape_cast %157 : vector<1x1x32xf32> to vector<1x32xf32>
    %159 = vector.broadcast %158 : vector<1x32xf32> to vector<16x32xf32>
    %160 = arith.addf %156, %159 : vector<16x32xf32>
    %161 = arith.addf %160, %3 : vector<16x32xf32>
    %c0_111 = arith.constant 0 : index
    %c0_112 = arith.constant 0 : index
    %c0_113 = arith.constant 0 : index
    %162 = vector.load %arg10[%c0_111, %c0_112, %c0_113] : memref<1x1x32xf32, #tpu.memory_space<vmem>>, vector<1x1x32xf32>
    %163 = vector.shape_cast %162 : vector<1x1x32xf32> to vector<1x32xf32>
    %c0_114 = arith.constant 0 : index
    %c0_115 = arith.constant 0 : index
    %c0_116 = arith.constant 0 : index
    %164 = vector.load %arg11[%c0_114, %c0_115, %c0_116] : memref<1x1x32xf32, #tpu.memory_space<vmem>>, vector<1x1x32xf32>
    %165 = vector.shape_cast %164 : vector<1x1x32xf32> to vector<1x32xf32>
    %cst_117 = arith.constant dense<0.000000e+00> : vector<16xf32>
    %166 = vector.multi_reduction <add>, %161, %cst_117 [1] : vector<16x32xf32> to vector<16xf32>
    %167 = vector.shape_cast %166 : vector<16xf32> to vector<16x1xf32>
    %cst_118 = arith.constant 3.200000e+01 : f32
    %168 = vector.broadcast %cst_118 : f32 to vector<16x1xf32>
    %169 = arith.divf %167, %168 : vector<16x1xf32>
    %170 = vector.broadcast %169 : vector<16x1xf32> to vector<16x32xf32>
    %171 = arith.subf %161, %170 : vector<16x32xf32>
    %172 = arith.mulf %171, %171 : vector<16x32xf32>
    %cst_119 = arith.constant dense<0.000000e+00> : vector<16xf32>
    %173 = vector.multi_reduction <add>, %172, %cst_119 [1] : vector<16x32xf32> to vector<16xf32>
    %174 = vector.shape_cast %173 : vector<16xf32> to vector<16x1xf32>
    %cst_120 = arith.constant 3.200000e+01 : f32
    %175 = vector.broadcast %cst_120 : f32 to vector<16x1xf32>
    %176 = arith.divf %174, %175 : vector<16x1xf32>
    %177 = vector.broadcast %169 : vector<16x1xf32> to vector<16x32xf32>
    %178 = arith.subf %161, %177 : vector<16x32xf32>
    %cst_121 = arith.constant 9.99999974E-6 : f32
    %179 = vector.broadcast %cst_121 : f32 to vector<16x1xf32>
    %180 = arith.addf %176, %179 : vector<16x1xf32>
    %181 = math.rsqrt %180 : vector<16x1xf32>
    %182 = vector.broadcast %181 : vector<16x1xf32> to vector<16x32xf32>
    %183 = arith.mulf %178, %182 : vector<16x32xf32>
    %184 = vector.broadcast %163 : vector<1x32xf32> to vector<16x32xf32>
    %185 = arith.mulf %183, %184 : vector<16x32xf32>
    %186 = vector.broadcast %165 : vector<1x32xf32> to vector<16x32xf32>
    %187 = arith.addf %185, %186 : vector<16x32xf32>
    %188 = arith.truncf %187 : vector<16x32xf32> to vector<16x32xbf16>
    %c0_122 = arith.constant 0 : index
    %c0_123 = arith.constant 0 : index
    %c0_124 = arith.constant 0 : index
    %189 = vector.load %arg12[%c0_122, %c0_123, %c0_124] : memref<1x32x64xbf16, #tpu.memory_space<vmem>>, vector<1x32x64xbf16>
    %190 = vector.shape_cast %189 : vector<1x32x64xbf16> to vector<32x64xbf16>
    %cst_125 = arith.constant dense<0.000000e+00> : vector<16x64xf32>
    %191 = tpu.matmul %188, %190, %cst_125 {dimension_numbers = #tpu.dot_dimension_numbers<[1], [0], [0], [1], [0, 0, 1, 1], [], []>} : vector<16x32xbf16>, vector<32x64xbf16>, vector<16x64xf32> -> vector<16x64xf32>
    %c0_126 = arith.constant 0 : index
    %c0_127 = arith.constant 0 : index
    %c0_128 = arith.constant 0 : index
    %192 = vector.load %arg13[%c0_126, %c0_127, %c0_128] : memref<1x1x64xf32, #tpu.memory_space<vmem>>, vector<1x1x64xf32>
    %193 = vector.shape_cast %192 : vector<1x1x64xf32> to vector<1x64xf32>
    %194 = vector.broadcast %193 : vector<1x64xf32> to vector<16x64xf32>
    %195 = arith.addf %191, %194 : vector<16x64xf32>
    %cst_129 = arith.constant 5.000000e-01 : f32
    %196 = vector.broadcast %cst_129 : f32 to vector<16x64xf32>
    %197 = arith.mulf %196, %195 : vector<16x64xf32>
    %cst_130 = arith.constant 0.707106769 : f32
    %198 = vector.broadcast %cst_130 : f32 to vector<16x64xf32>
    %199 = arith.mulf %195, %198 : vector<16x64xf32>
    %200 = math.erf %199 : vector<16x64xf32>
    %cst_131 = arith.constant 1.000000e+00 : f32
    %201 = vector.broadcast %cst_131 : f32 to vector<16x64xf32>
    %202 = arith.addf %201, %200 : vector<16x64xf32>
    %203 = arith.mulf %197, %202 : vector<16x64xf32>
    %204 = arith.truncf %203 : vector<16x64xf32> to vector<16x64xbf16>
    %c0_132 = arith.constant 0 : index
    %c0_133 = arith.constant 0 : index
    %c0_134 = arith.constant 0 : index
    %205 = vector.load %arg14[%c0_132, %c0_133, %c0_134] : memref<1x64x32xbf16, #tpu.memory_space<vmem>>, vector<1x64x32xbf16>
    %206 = vector.shape_cast %205 : vector<1x64x32xbf16> to vector<64x32xbf16>
    %cst_135 = arith.constant dense<0.000000e+00> : vector<16x32xf32>
    %207 = tpu.matmul %204, %206, %cst_135 {dimension_numbers = #tpu.dot_dimension_numbers<[1], [0], [0], [1], [0, 0, 1, 1], [], []>} : vector<16x64xbf16>, vector<64x32xbf16>, vector<16x32xf32> -> vector<16x32xf32>
    %c0_136 = arith.constant 0 : index
    %c0_137 = arith.constant 0 : index
    %c0_138 = arith.constant 0 : index
    %208 = vector.load %arg15[%c0_136, %c0_137, %c0_138] : memref<1x1x32xf32, #tpu.memory_space<vmem>>, vector<1x1x32xf32>
    %209 = vector.shape_cast %208 : vector<1x1x32xf32> to vector<1x32xf32>
    %210 = vector.broadcast %209 : vector<1x32xf32> to vector<16x32xf32>
    %211 = arith.addf %207, %210 : vector<16x32xf32>
    %212 = arith.addf %211, %161 : vector<16x32xf32>
    %c0_139 = arith.constant 0 : index
    %c0_140 = arith.constant 0 : index
    %213 = vector.load %arg17[%c0_139, %c0_140] : memref<16x32xf32, #tpu.memory_space<vmem>>, vector<16x32xf32>
    tpu.vector_store %arg17[%c0_139, %c0_140], %212 {strides = array<i32>} : memref<16x32xf32, #tpu.memory_space<vmem>>, vector<16x32xf32>,
    %c1_i32 = arith.constant 1 : i32
    %214 = arith.cmpi eq, %arg0, %c1_i32 : i32
    %215 = arith.extui %214 : i1 to i32
    %c0_i32_141 = arith.constant 0 : i32
    %216 = arith.cmpi ne, %215, %c0_i32_141 : i32
    scf.if %216 {
      %c0_142 = arith.constant 0 : index
      %c0_143 = arith.constant 0 : index
      %217 = vector.load %arg16[%c0_142, %c0_143] : memref<16x32xf32, #tpu.memory_space<vmem>>, vector<16x32xf32>
      tpu.vector_store %arg16[%c0_142, %c0_143], %212 {strides = array<i32>} : memref<16x32xf32, #tpu.memory_space<vmem>>, vector<16x32xf32>,
    } else {
    }
    return
  }
  func.func @transform_0(%arg0: i32) -> (i32, i32) {
    %c0_i32 = arith.constant 0 : i32
    %c0_i32_0 = arith.constant 0 : i32
    %c0_i32_1 = arith.constant 0 : i32
    return %c0_i32, %c0_i32_0 : i32, i32
  }
  func.func @transform_1(%arg0: i32) -> (i32, i32) {
    %c0_i32 = arith.constant 0 : i32
    %c0_i32_0 = arith.constant 0 : i32
    %c0_i32_1 = arith.constant 0 : i32
    return %c0_i32, %c0_i32_0 : i32, i32
  }
  func.func @transform_2(%arg0: i32) -> (i32, i32, i32) {
    %c0_i32 = arith.constant 0 : i32
    %c0_i32_0 = arith.constant 0 : i32
    %c0_i32_1 = arith.constant 0 : i32
    return %arg0, %c0_i32, %c0_i32_0 : i32, i32, i32
  }
  func.func @transform_3(%arg0: i32) -> (i32, i32, i32) {
    %c0_i32 = arith.constant 0 : i32
    %c0_i32_0 = arith.constant 0 : i32
    %c0_i32_1 = arith.constant 0 : i32
    return %arg0, %c0_i32, %c0_i32_0 : i32, i32, i32
  }
  func.func @transform_4(%arg0: i32) -> (i32, i32, i32, i32) {
    %c0_i32 = arith.constant 0 : i32
    %c0_i32_0 = arith.constant 0 : i32
    %c0_i32_1 = arith.constant 0 : i32
    %c0_i32_2 = arith.constant 0 : i32
    return %arg0, %c0_i32, %c0_i32_0, %c0_i32_1 : i32, i32, i32, i32
  }
  func.func @transform_5(%arg0: i32) -> (i32, i32, i32, i32) {
    %c0_i32 = arith.constant 0 : i32
    %c0_i32_0 = arith.constant 0 : i32
    %c0_i32_1 = arith.constant 0 : i32
    %c0_i32_2 = arith.constant 0 : i32
    return %arg0, %c0_i32, %c0_i32_0, %c0_i32_1 : i32, i32, i32, i32
  }
  func.func @transform_6(%arg0: i32) -> (i32, i32, i32, i32) {
    %c0_i32 = arith.constant 0 : i32
    %c0_i32_0 = arith.constant 0 : i32
    %c0_i32_1 = arith.constant 0 : i32
    %c0_i32_2 = arith.constant 0 : i32
    return %arg0, %c0_i32, %c0_i32_0, %c0_i32_1 : i32, i32, i32, i32
  }
  func.func @transform_7(%arg0: i32) -> (i32, i32, i32, i32) {
    %c0_i32 = arith.constant 0 : i32
    %c0_i32_0 = arith.constant 0 : i32
    %c0_i32_1 = arith.constant 0 : i32
    %c0_i32_2 = arith.constant 0 : i32
    return %arg0, %c0_i32, %c0_i32_0, %c0_i32_1 : i32, i32, i32, i32
  }
  func.func @transform_8(%arg0: i32) -> (i32, i32, i32) {
    %c0_i32 = arith.constant 0 : i32
    %c0_i32_0 = arith.constant 0 : i32
    %c0_i32_1 = arith.constant 0 : i32
    return %arg0, %c0_i32, %c0_i32_0 : i32, i32, i32
  }
  func.func @transform_9(%arg0: i32) -> (i32, i32, i32) {
    %c0_i32 = arith.constant 0 : i32
    %c0_i32_0 = arith.constant 0 : i32
    %c0_i32_1 = arith.constant 0 : i32
    return %arg0, %c0_i32, %c0_i32_0 : i32, i32, i32
  }
  func.func @transform_10(%arg0: i32) -> (i32, i32, i32) {
    %c0_i32 = arith.constant 0 : i32
    %c0_i32_0 = arith.constant 0 : i32
    %c0_i32_1 = arith.constant 0 : i32
    return %arg0, %c0_i32, %c0_i32_0 : i32, i32, i32
  }
  func.func @transform_11(%arg0: i32) -> (i32, i32, i32) {
    %c0_i32 = arith.constant 0 : i32
    %c0_i32_0 = arith.constant 0 : i32
    %c0_i32_1 = arith.constant 0 : i32
    return %arg0, %c0_i32, %c0_i32_0 : i32, i32, i32
  }
  func.func @transform_12(%arg0: i32) -> (i32, i32, i32) {
    %c0_i32 = arith.constant 0 : i32
    %c0_i32_0 = arith.constant 0 : i32
    %c0_i32_1 = arith.constant 0 : i32
    return %arg0, %c0_i32, %c0_i32_0 : i32, i32, i32
  }
  func.func @transform_13(%arg0: i32) -> (i32, i32, i32) {
    %c0_i32 = arith.constant 0 : i32
    %c0_i32_0 = arith.constant 0 : i32
    %c0_i32_1 = arith.constant 0 : i32
    return %arg0, %c0_i32, %c0_i32_0 : i32, i32, i32
  }
  func.func @transform_14(%arg0: i32) -> (i32, i32, i32) {
    %c0_i32 = arith.constant 0 : i32
    %c0_i32_0 = arith.constant 0 : i32
    %c0_i32_1 = arith.constant 0 : i32
    return %arg0, %c0_i32, %c0_i32_0 : i32, i32, i32
  }
  func.func @transform_15(%arg0: i32) -> (i32, i32) {
    %c0_i32 = arith.constant 0 : i32
    %c0_i32_0 = arith.constant 0 : i32
    %c0_i32_1 = arith.constant 0 : i32
    return %c0_i32, %c0_i32_0 : i32, i32
  }
}

</mosaic_0001>

<llo_original>
// kernel: transformer_forward.1
$region0: #{transformer_forward.1}
  #allocation0 [shape = 'u32[]', space=smem, size = 0x4, offset = 0x4, fixed_abs, tag = 'smem constant byte address 0x4 - core index']
  #allocation1 [shape = 'u32[144,128]{1,0:T(1,128)}', space=vmem, size = 0x12000, scoped, tag = 'internal scratch']
  #allocation2 [shape = 'f32[16,32]{1,0:T(8,128)}', space=vmem, size = 0x2000, scoped, tag = 'scratch operand']
  %s0 = inlined_call_operand.vmem [shape: f32[16,32], index: 0, kind: input, shape index: {}]
  %s1 = inlined_call_operand.vmem [shape: f32[16,16], index: 1, kind: input, shape index: {}]
  %s2 = inlined_call_operand.vmem [shape: f32[2,1,32], index: 2, kind: input, shape index: {}]
  %s3 = inlined_call_operand.vmem [shape: f32[2,1,32], index: 3, kind: input, shape index: {}]
  %s4 = inlined_call_operand.vmem [shape: bf16[2,4,32,16], index: 4, kind: input, shape index: {}]
  %s5 = inlined_call_operand.vmem [shape: bf16[2,4,32,16], index: 5, kind: input, shape index: {}]
  %s6 = inlined_call_operand.vmem [shape: bf16[2,4,32,16], index: 6, kind: input, shape index: {}]
  %s7 = inlined_call_operand.vmem [shape: bf16[2,4,16,32], index: 7, kind: input, shape index: {}]
  %s8 = inlined_call_operand.vmem [shape: f32[2,1,32], index: 8, kind: input, shape index: {}]
  %s9 = inlined_call_operand.vmem [shape: f32[2,1,32], index: 9, kind: input, shape index: {}]
  %s10 = inlined_call_operand.vmem [shape: f32[2,1,32], index: 10, kind: input, shape index: {}]
  %s11 = inlined_call_operand.vmem [shape: bf16[2,32,64], index: 11, kind: input, shape index: {}]
  %s12 = inlined_call_operand.vmem [shape: f32[2,1,64], index: 12, kind: input, shape index: {}]
  %s13 = inlined_call_operand.vmem [shape: bf16[2,64,32], index: 13, kind: input, shape index: {}]
  %s14 = inlined_call_operand.vmem [shape: f32[2,1,32], index: 14, kind: input, shape index: {}]
  %s15 = inlined_call_operand.hbm [shape: f32[16,32], index: 15, kind: output, shape index: {}]
  %s16 = sld [smem:[#allocation0]]
  $region101: #{transformer_forward.1} parent=0
    _
  %s18 = ssub.s32 1, %s16
  %s19 = scalar_select 0, %s18, %s16
  $region1: #{transformer_forward.1} parent=0
    #allocation3 [shape = 'u8[8192]{0}', space=vmem, size = 0x2000, scoped, tag = 'output window, operand 0, single buffered']
    #allocation4 [shape = 's32[2]{0}', space=sflag, size = 0x8, scoped, tag = 'scoped memory for transformer_forward.1']
    %20 = vsyncpa [#allocation4], 0
    loop: start=0, step=1, limit=4
    $region2: #{transformer_forward.1} parent=1 // loop_pre_header
      _
    $region3: #{transformer_forward.1} parent=1 // loop_header
      %s22 = sphi 0, %s26
      %p23 = scmp.ge.s32.totalorder %s22, 4
      %s30 = sphi 0, %s30
      %s32 = sphi 0, %s30
      %s33 = sphi 0, %s32
      %s47 = sphi 0, %s33
      %s51 = sphi 0, %s51
      %s53 = sphi 0, %s51
      %s54 = sphi 0, %s53
      %s68 = sphi 0, %s54
      %s74 = sphi 0, %s76
      %s77 = sphi 0, %s74
      %s78 = sphi 0, %s77
      %s94 = sphi 0, %s78
      %s100 = sphi 0, %s102
      %s103 = sphi 0, %s100
      %s104 = sphi 0, %s103
      %s120 = sphi 0, %s104
      %s126 = sphi 0, %s128
      %s129 = sphi 0, %s126
      %s130 = sphi 0, %s129
      %s146 = sphi 0, %s130
      %s152 = sphi 0, %s154
      %s155 = sphi 0, %s152
      %s156 = sphi 0, %s155
      %s172 = sphi 0, %s156
      %s178 = sphi 0, %s180
      %s181 = sphi 0, %s178
      %s182 = sphi 0, %s181
      %s198 = sphi 0, %s182
      %s204 = sphi 0, %s206
      %s207 = sphi 0, %s204
      %s208 = sphi 0, %s207
      %s224 = sphi 0, %s208
      %s230 = sphi 0, %s232
      %s233 = sphi 0, %s230
      %s234 = sphi 0, %s233
      %s250 = sphi 0, %s234
      %s256 = sphi 0, %s258
      %s259 = sphi 0, %s256
      %s260 = sphi 0, %s259
      %s276 = sphi 0, %s260
      %s282 = sphi 0, %s284
      %s285 = sphi 0, %s282
      %s286 = sphi 0, %s285
      %s302 = sphi 0, %s286
      %s308 = sphi 0, %s310
      %s311 = sphi 0, %s308
      %s312 = sphi 0, %s311
      %s328 = sphi 0, %s312
      %s334 = sphi 0, %s336
      %s337 = sphi 0, %s334
      %s338 = sphi 0, %s337
      %s354 = sphi 0, %s338
      %s360 = sphi 0, %s362
      %s363 = sphi 0, %s360
      %s364 = sphi 0, %s363
      %s380 = sphi 0, %s364
      %s386 = sphi 0, %s388
      %s389 = sphi 0, %s386
      %s390 = sphi 0, %s389
      %s406 = sphi 0, %s390
      %s410 = sphi 0, %s410
      %s412 = sphi 0, %s410
      %s413 = sphi 0, %s412
      %s427 = sphi 0, %s413
    $region4: #{transformer_forward.1} parent=1 // loop_header_branch
      %25 = sbr.rel (%p23) target = $region8
    $region5: #{transformer_forward.1} parent=1 // loop_body
      %s27 = ssub.s32 %s22, 1
      %s28 = ssub.s32 %s22, 2
      %s29 = sadd.s32 %s22, 1
      %s31 = sadd.s32 %s30, 1
      %p34 = scmp.eq.s32.totalorder %s22, 1
      %p35 = scmp.ne.s32.totalorder %s30, %s32
      %p36 = scmp.eq.s32.totalorder %s22, 0
      %p37 = por %p35, %p36
      %p38 = scmp.ne.s32.totalorder %s30, %s32
      %p39 = scmp.eq.s32.totalorder %s27, 1
      %p40 = por %p38, %p39
      %p41 = scmp.ne.s32.totalorder %s32, %s33
      %p42 = scmp.eq.s32.totalorder %s27, 0
      %p43 = por %p41, %p42
      %p44 = scmp.ne.s32.totalorder %s32, %s33
      %p45 = scmp.eq.s32.totalorder %s28, 1
      %p46 = por %p44, %p45
      %p48 = scmp.ne.s32.totalorder %s33, %s47
      %p49 = scmp.eq.s32.totalorder %s28, 0
      %p50 = por %p48, %p49
      %s52 = sadd.s32 %s51, 1
      %p55 = scmp.eq.s32.totalorder %s22, 1
      %p56 = scmp.ne.s32.totalorder %s51, %s53
      %p57 = scmp.eq.s32.totalorder %s22, 0
      %p58 = por %p56, %p57
      %p59 = scmp.ne.s32.totalorder %s51, %s53
      %p60 = scmp.eq.s32.totalorder %s27, 1
      %p61 = por %p59, %p60
      %p62 = scmp.ne.s32.totalorder %s53, %s54
      %p63 = scmp.eq.s32.totalorder %s27, 0
      %p64 = por %p62, %p63
      %p65 = scmp.ne.s32.totalorder %s53, %s54
      %p66 = scmp.eq.s32.totalorder %s28, 1
      %p67 = por %p65, %p66
      %p69 = scmp.ne.s32.totalorder %s54, %s68
      %p70 = scmp.eq.s32.totalorder %s28, 0
      %p71 = por %p69, %p70
      %s72 = ssub.s32 %s22, %s29
      %p73 = scmp.eq.s32.totalorder %s72, 0
      %s75 = sadd.s32 %s74, 1
      %s76 = scalar_select %p73, %s74, %s75
      %p79 = pneg %p73
      %p80 = scmp.eq.s32.totalorder %s22, 1
      %p81 = por %p79, %p80
      %p82 = scmp.ne.s32.totalorder %s74, %s77
      %p83 = scmp.eq.s32.totalorder %s22, 0
      %p84 = por %p82, %p83
      %p85 = scmp.ne.s32.totalorder %s74, %s77
      %p86 = scmp.eq.s32.totalorder %s27, 1
      %p87 = por %p85, %p86
      %p88 = scmp.ne.s32.totalorder %s77, %s78
      %p89 = scmp.eq.s32.totalorder %s27, 0
      %p90 = por %p88, %p89
      %p91 = scmp.ne.s32.totalorder %s77, %s78
      %p92 = scmp.eq.s32.totalorder %s28, 1
      %p93 = por %p91, %p92
      %p95 = scmp.ne.s32.totalorder %s78, %s94
      %p96 = scmp.eq.s32.totalorder %s28, 0
      %p97 = por %p95, %p96
      %s98 = ssub.s32 %s22, %s29
      %p99 = scmp.eq.s32.totalorder %s98, 0
      %s101 = sadd.s32 %s100, 1
      %s102 = scalar_select %p99, %s100, %s101
      %p105 = pneg %p99
      %p106 = scmp.eq.s32.totalorder %s22, 1
      %p107 = por %p105, %p106
      %p108 = scmp.ne.s32.totalorder %s100, %s103
      %p109 = scmp.eq.s32.totalorder %s22, 0
      %p110 = por %p108, %p109
      %p111 = scmp.ne.s32.totalorder %s100, %s103
      %p112 = scmp.eq.s32.totalorder %s27, 1
      %p113 = por %p111, %p112
      %p114 = scmp.ne.s32.totalorder %s103, %s104
      %p115 = scmp.eq.s32.totalorder %s27, 0
      %p116 = por %p114, %p115
      %p117 = scmp.ne.s32.totalorder %s103, %s104
      %p118 = scmp.eq.s32.totalorder %s28, 1
      %p119 = por %p117, %p118
      %p121 = scmp.ne.s32.totalorder %s104, %s120
      %p122 = scmp.eq.s32.totalorder %s28, 0
      %p123 = por %p121, %p122
      %s124 = ssub.s32 %s22, %s29
      %p125 = scmp.eq.s32.totalorder %s124, 0
      %s127 = sadd.s32 %s126, 1
      %s128 = scalar_select %p125, %s126, %s127
      %p131 = pneg %p125
      %p132 = scmp.eq.s32.totalorder %s22, 1
      %p133 = por %p131, %p132
      %p134 = scmp.ne.s32.totalorder %s126, %s129
      %p135 = scmp.eq.s32.totalorder %s22, 0
      %p136 = por %p134, %p135
      %p137 = scmp.ne.s32.totalorder %s126, %s129
      %p138 = scmp.eq.s32.totalorder %s27, 1
      %p139 = por %p137, %p138
      %p140 = scmp.ne.s32.totalorder %s129, %s130
      %p141 = scmp.eq.s32.totalorder %s27, 0
      %p142 = por %p140, %p141
      %p143 = scmp.ne.s32.totalorder %s129, %s130
      %p144 = scmp.eq.s32.totalorder %s28, 1
      %p145 = por %p143, %p144
      %p147 = scmp.ne.s32.totalorder %s130, %s146
      %p148 = scmp.eq.s32.totalorder %s28, 0
      %p149 = por %p147, %p148
      %s150 = ssub.s32 %s22, %s29
      %p151 = scmp.eq.s32.totalorder %s150, 0
      %s153 = sadd.s32 %s152, 1
      %s154 = scalar_select %p151, %s152, %s153
      %p157 = pneg %p151
      %p158 = scmp.eq.s32.totalorder %s22, 1
      %p159 = por %p157, %p158
      %p160 = scmp.ne.s32.totalorder %s152, %s155
      %p161 = scmp.eq.s32.totalorder %s22, 0
      %p162 = por %p160, %p161
      %p163 = scmp.ne.s32.totalorder %s152, %s155
      %p164 = scmp.eq.s32.totalorder %s27, 1
      %p165 = por %p163, %p164
      %p166 = scmp.ne.s32.totalorder %s155, %s156
      %p167 = scmp.eq.s32.totalorder %s27, 0
      %p168 = por %p166, %p167
      %p169 = scmp.ne.s32.totalorder %s155, %s156
      %p170 = scmp.eq.s32.totalorder %s28, 1
      %p171 = por %p169, %p170
      %p173 = scmp.ne.s32.totalorder %s156, %s172
      %p174 = scmp.eq.s32.totalorder %s28, 0
      %p175 = por %p173, %p174
      %s176 = ssub.s32 %s22, %s29
      %p177 = scmp.eq.s32.totalorder %s176, 0
      %s179 = sadd.s32 %s178, 1
      %s180 = scalar_select %p177, %s178, %s179
      %p183 = pneg %p177
      %p184 = scmp.eq.s32.totalorder %s22, 1
      %p185 = por %p183, %p184
      %p186 = scmp.ne.s32.totalorder %s178, %s181
      %p187 = scmp.eq.s32.totalorder %s22, 0
      %p188 = por %p186, %p187
      %p189 = scmp.ne.s32.totalorder %s178, %s181
      %p190 = scmp.eq.s32.totalorder %s27, 1
      %p191 = por %p189, %p190
      %p192 = scmp.ne.s32.totalorder %s181, %s182
      %p193 = scmp.eq.s32.totalorder %s27, 0
      %p194 = por %p192, %p193
      %p195 = scmp.ne.s32.totalorder %s181, %s182
      %p196 = scmp.eq.s32.totalorder %s28, 1
      %p197 = por %p195, %p196
      %p199 = scmp.ne.s32.totalorder %s182, %s198
      %p200 = scmp.eq.s32.totalorder %s28, 0
      %p201 = por %p199, %p200
      %s202 = ssub.s32 %s22, %s29
      %p203 = scmp.eq.s32.totalorder %s202, 0
      %s205 = sadd.s32 %s204, 1
      %s206 = scalar_select %p203, %s204, %s205
      %p209 = pneg %p203
      %p210 = scmp.eq.s32.totalorder %s22, 1
      %p211 = por %p209, %p210
      %p212 = scmp.ne.s32.totalorder %s204, %s207
      %p213 = scmp.eq.s32.totalorder %s22, 0
      %p214 = por %p212, %p213
      %p215 = scmp.ne.s32.totalorder %s204, %s207
      %p216 = scmp.eq.s32.totalorder %s27, 1
      %p217 = por %p215, %p216
      %p218 = scmp.ne.s32.totalorder %s207, %s208
      %p219 = scmp.eq.s32.totalorder %s27, 0
      %p220 = por %p218, %p219
      %p221 = scmp.ne.s32.totalorder %s207, %s208
      %p222 = scmp.eq.s32.totalorder %s28, 1
      %p223 = por %p221, %p222
      %p225 = scmp.ne.s32.totalorder %s208, %s224
      %p226 = scmp.eq.s32.totalorder %s28, 0
      %p227 = por %p225, %p226
      %s228 = ssub.s32 %s22, %s29
      %p229 = scmp.eq.s32.totalorder %s228, 0
      %s231 = sadd.s32 %s230, 1
      %s232 = scalar_select %p229, %s230, %s231
      %p235 = pneg %p229
      %p236 = scmp.eq.s32.totalorder %s22, 1
      %p237 = por %p235, %p236
      %p238 = scmp.ne.s32.totalorder %s230, %s233
      %p239 = scmp.eq.s32.totalorder %s22, 0
      %p240 = por %p238, %p239
      %p241 = scmp.ne.s32.totalorder %s230, %s233
      %p242 = scmp.eq.s32.totalorder %s27, 1
      %p243 = por %p241, %p242
      %p244 = scmp.ne.s32.totalorder %s233, %s234
      %p245 = scmp.eq.s32.totalorder %s27, 0
      %p246 = por %p244, %p245
      %p247 = scmp.ne.s32.totalorder %s233, %s234
      %p248 = scmp.eq.s32.totalorder %s28, 1
      %p249 = por %p247, %p248
      %p251 = scmp.ne.s32.totalorder %s234, %s250
      %p252 = scmp.eq.s32.totalorder %s28, 0
      %p253 = por %p251, %p252
      %s254 = ssub.s32 %s22, %s29
      %p255 = scmp.eq.s32.totalorder %s254, 0
      %s257 = sadd.s32 %s256, 1
      %s258 = scalar_select %p255, %s256, %s257
      %p261 = pneg %p255
      %p262 = scmp.eq.s32.totalorder %s22, 1
      %p263 = por %p261, %p262
      %p264 = scmp.ne.s32.totalorder %s256, %s259
      %p265 = scmp.eq.s32.totalorder %s22, 0
      %p266 = por %p264, %p265
      %p267 = scmp.ne.s32.totalorder %s256, %s259
      %p268 = scmp.eq.s32.totalorder %s27, 1
      %p269 = por %p267, %p268
      %p270 = scmp.ne.s32.totalorder %s259, %s260
      %p271 = scmp.eq.s32.totalorder %s27, 0
      %p272 = por %p270, %p271
      %p273 = scmp.ne.s32.totalorder %s259, %s260
      %p274 = scmp.eq.s32.totalorder %s28, 1
      %p275 = por %p273, %p274
      %p277 = scmp.ne.s32.totalorder %s260, %s276
      %p278 = scmp.eq.s32.totalorder %s28, 0
      %p279 = por %p277, %p278
      %s280 = ssub.s32 %s22, %s29
      %p281 = scmp.eq.s32.totalorder %s280, 0
      %s283 = sadd.s32 %s282, 1
      %s284 = scalar_select %p281, %s282, %s283
      %p287 = pneg %p281
      %p288 = scmp.eq.s32.totalorder %s22, 1
      %p289 = por %p287, %p288
      %p290 = scmp.ne.s32.totalorder %s282, %s285
      %p291 = scmp.eq.s32.totalorder %s22, 0
      %p292 = por %p290, %p291
      %p293 = scmp.ne.s32.totalorder %s282, %s285
      %p294 = scmp.eq.s32.totalorder %s27, 1
      %p295 = por %p293, %p294
      %p296 = scmp.ne.s32.totalorder %s285, %s286
      %p297 = scmp.eq.s32.totalorder %s27, 0
      %p298 = por %p296, %p297
      %p299 = scmp.ne.s32.totalorder %s285, %s286
      %p300 = scmp.eq.s32.totalorder %s28, 1
      %p301 = por %p299, %p300
      %p303 = scmp.ne.s32.totalorder %s286, %s302
      %p304 = scmp.eq.s32.totalorder %s28, 0
      %p305 = por %p303, %p304
      %s306 = ssub.s32 %s22, %s29
      %p307 = scmp.eq.s32.totalorder %s306, 0
      %s309 = sadd.s32 %s308, 1
      %s310 = scalar_select %p307, %s308, %s309
      %p313 = pneg %p307
      %p314 = scmp.eq.s32.totalorder %s22, 1
      %p315 = por %p313, %p314
      %p316 = scmp.ne.s32.totalorder %s308, %s311
      %p317 = scmp.eq.s32.totalorder %s22, 0
      %p318 = por %p316, %p317
      %p319 = scmp.ne.s32.totalorder %s308, %s311
      %p320 = scmp.eq.s32.totalorder %s27, 1
      %p321 = por %p319, %p320
      %p322 = scmp.ne.s32.totalorder %s311, %s312
      %p323 = scmp.eq.s32.totalorder %s27, 0
      %p324 = por %p322, %p323
      %p325 = scmp.ne.s32.totalorder %s311, %s312
      %p326 = scmp.eq.s32.totalorder %s28, 1
      %p327 = por %p325, %p326
      %p329 = scmp.ne.s32.totalorder %s312, %s328
      %p330 = scmp.eq.s32.totalorder %s28, 0
      %p331 = por %p329, %p330
      %s332 = ssub.s32 %s22, %s29
      %p333 = scmp.eq.s32.totalorder %s332, 0
      %s335 = sadd.s32 %s334, 1
      %s336 = scalar_select %p333, %s334, %s335
      %p339 = pneg %p333
      %p340 = scmp.eq.s32.totalorder %s22, 1
      %p341 = por %p339, %p340
      %p342 = scmp.ne.s32.totalorder %s334, %s337
      %p343 = scmp.eq.s32.totalorder %s22, 0
      %p344 = por %p342, %p343
      %p345 = scmp.ne.s32.totalorder %s334, %s337
      %p346 = scmp.eq.s32.totalorder %s27, 1
      %p347 = por %p345, %p346
      %p348 = scmp.ne.s32.totalorder %s337, %s338
      %p349 = scmp.eq.s32.totalorder %s27, 0
      %p350 = por %p348, %p349
      %p351 = scmp.ne.s32.totalorder %s337, %s338
      %p352 = scmp.eq.s32.totalorder %s28, 1
      %p353 = por %p351, %p352
      %p355 = scmp.ne.s32.totalorder %s338, %s354
      %p356 = scmp.eq.s32.totalorder %s28, 0
      %p357 = por %p355, %p356
      %s358 = ssub.s32 %s22, %s29
      %p359 = scmp.eq.s32.totalorder %s358, 0
      %s361 = sadd.s32 %s360, 1
      %s362 = scalar_select %p359, %s360, %s361
      %p365 = pneg %p359
      %p366 = scmp.eq.s32.totalorder %s22, 1
      %p367 = por %p365, %p366
      %p368 = scmp.ne.s32.totalorder %s360, %s363
      %p369 = scmp.eq.s32.totalorder %s22, 0
      %p370 = por %p368, %p369
      %p371 = scmp.ne.s32.totalorder %s360, %s363
      %p372 = scmp.eq.s32.totalorder %s27, 1
      %p373 = por %p371, %p372
      %p374 = scmp.ne.s32.totalorder %s363, %s364
      %p375 = scmp.eq.s32.totalorder %s27, 0
      %p376 = por %p374, %p375
      %p377 = scmp.ne.s32.totalorder %s363, %s364
      %p378 = scmp.eq.s32.totalorder %s28, 1
      %p379 = por %p377, %p378
      %p381 = scmp.ne.s32.totalorder %s364, %s380
      %p382 = scmp.eq.s32.totalorder %s28, 0
      %p383 = por %p381, %p382
      %s384 = ssub.s32 %s22, %s29
      %p385 = scmp.eq.s32.totalorder %s384, 0
      %s387 = sadd.s32 %s386, 1
      %s388 = scalar_select %p385, %s386, %s387
      %p391 = pneg %p385
      %p392 = scmp.eq.s32.totalorder %s22, 1
      %p393 = por %p391, %p392
      %p394 = scmp.ne.s32.totalorder %s386, %s389
      %p395 = scmp.eq.s32.totalorder %s22, 0
      %p396 = por %p394, %p395
      %p397 = scmp.ne.s32.totalorder %s386, %s389
      %p398 = scmp.eq.s32.totalorder %s27, 1
      %p399 = por %p397, %p398
      %p400 = scmp.ne.s32.totalorder %s389, %s390
      %p401 = scmp.eq.s32.totalorder %s27, 0
      %p402 = por %p400, %p401
      %p403 = scmp.ne.s32.totalorder %s389, %s390
      %p404 = scmp.eq.s32.totalorder %s28, 1
      %p405 = por %p403, %p404
      %p407 = scmp.ne.s32.totalorder %s390, %s406
      %p408 = scmp.eq.s32.totalorder %s28, 0
      %p409 = por %p407, %p408
      %s411 = sadd.s32 %s410, 1
      %p414 = scmp.eq.s32.totalorder %s22, 1
      %p415 = scmp.ne.s32.totalorder %s410, %s412
      %p416 = scmp.eq.s32.totalorder %s22, 0
      %p417 = por %p415, %p416
      %p418 = scmp.ne.s32.totalorder %s410, %s412
      %p419 = scmp.eq.s32.totalorder %s27, 1
      %p420 = por %p418, %p419
      %p421 = scmp.ne.s32.totalorder %s412, %s413
      %p422 = scmp.eq.s32.totalorder %s27, 0
      %p423 = por %p421, %p422
      %p424 = scmp.ne.s32.totalorder %s412, %s413
      %p425 = scmp.eq.s32.totalorder %s28, 1
      %p426 = por %p424, %p425
      %p428 = scmp.ne.s32.totalorder %s413, %s427
      %p429 = scmp.eq.s32.totalorder %s28, 0
      %p430 = por %p428, %p429
      %p431 = scmp.le.s32.totalorder 1, %s22
      %p432 = scmp.lt.s32.totalorder %s22, 3
      %p433 = pnand %p431, %p432
      %p434 = pneg %p433
      // Predicated region
      $region9: #{transformer_forward.1} parent=5 // pred_check
        _
      $region10: #{transformer_forward.1} parent=5 // pred_check_branch
        %436 = sbr.rel (%p433) target = $region12
      $region11: #{transformer_forward.1} parent=5 // pred_region
        %s437 = ssub.s32 %s22, 1
        // Predicated region
        $region13: #{transformer_forward.1} parent=11 // pred_check
          %p438 = pneg %p43
        $region14: #{transformer_forward.1} parent=11 // pred_check_branch
          %440 = sbr.rel (%p438) target = $region16
        $region15: #{transformer_forward.1} parent=11 // pred_region
          _
        $region16: #{transformer_forward.1} parent=11 // pred_fallthru
          _
        // Predicated region
        $region17: #{transformer_forward.1} parent=11 // pred_check
          %p441 = pneg %p64
        $region18: #{transformer_forward.1} parent=11 // pred_check_branch
          %443 = sbr.rel (%p441) target = $region20
        $region19: #{transformer_forward.1} parent=11 // pred_region
          _
        $region20: #{transformer_forward.1} parent=11 // pred_fallthru
          _
      $region12: #{transformer_forward.1} parent=5 // pred_fallthru
        _
      %p444 = scmp.lt.s32.totalorder %s22, 2
      // Predicated region
      $region21: #{transformer_forward.1} parent=5 // pred_check
        %p445 = pneg %p444
      $region22: #{transformer_forward.1} parent=5 // pred_check_branch
        %447 = sbr.rel (%p445) target = $region24
      $region23: #{transformer_forward.1} parent=5 // pred_region
        // Predicated region
        $region25: #{transformer_forward.1} parent=23 // pred_check
          %p448 = pneg %p84
        $region26: #{transformer_forward.1} parent=23 // pred_check_branch
          %450 = sbr.rel (%p448) target = $region28
        $region27: #{transformer_forward.1} parent=23 // pred_region
          %p451 = scmp.lt.s32.totalorder %s22, 1
          %s452 = scalar_select %p451, %s22, 1
          %s453 = scalar_lea.vmem %s2, %s452
        $region28: #{transformer_forward.1} parent=23 // pred_fallthru
          _
        // Predicated region
        $region29: #{transformer_forward.1} parent=23 // pred_check
          %p454 = pneg %p110
        $region30: #{transformer_forward.1} parent=23 // pred_check_branch
          %456 = sbr.rel (%p454) target = $region32
        $region31: #{transformer_forward.1} parent=23 // pred_region
          %p457 = scmp.lt.s32.totalorder %s22, 1
          %s458 = scalar_select %p457, %s22, 1
          %s459 = scalar_lea.vmem %s3, %s458
        $region32: #{transformer_forward.1} parent=23 // pred_fallthru
          _
        // Predicated region
        $region33: #{transformer_forward.1} parent=23 // pred_check
          %p460 = pneg %p136
        $region34: #{transformer_forward.1} parent=23 // pred_check_branch
          %462 = sbr.rel (%p460) target = $region36
        $region35: #{transformer_forward.1} parent=23 // pred_region
          %p463 = scmp.lt.s32.totalorder %s22, 1
          %s464 = scalar_select %p463, %s22, 1
          %s465 = smul.addr %s464, 16
          %s466 = smul.addr %s465, 4
          %s467 = scalar_lea.vmem %s4, %s466
        $region36: #{transformer_forward.1} parent=23 // pred_fallthru
          _
        // Predicated region
        $region37: #{transformer_forward.1} parent=23 // pred_check
          %p468 = pneg %p162
        $region38: #{transformer_forward.1} parent=23 // pred_check_branch
          %470 = sbr.rel (%p468) target = $region40
        $region39: #{transformer_forward.1} parent=23 // pred_region
          %p471 = scmp.lt.s32.totalorder %s22, 1
          %s472 = scalar_select %p471, %s22, 1
          %s473 = smul.addr %s472, 16
          %s474 = smul.addr %s473, 4
          %s475 = scalar_lea.vmem %s5, %s474
        $region40: #{transformer_forward.1} parent=23 // pred_fallthru
          _
        // Predicated region
        $region41: #{transformer_forward.1} parent=23 // pred_check
          %p476 = pneg %p188
        $region42: #{transformer_forward.1} parent=23 // pred_check_branch
          %478 = sbr.rel (%p476) target = $region44
        $region43: #{transformer_forward.1} parent=23 // pred_region
          %p479 = scmp.lt.s32.totalorder %s22, 1
          %s480 = scalar_select %p479, %s22, 1
          %s481 = smul.addr %s480, 16
          %s482 = smul.addr %s481, 4
          %s483 = scalar_lea.vmem %s6, %s482
        $region44: #{transformer_forward.1} parent=23 // pred_fallthru
          _
        // Predicated region
        $region45: #{transformer_forward.1} parent=23 // pred_check
          %p484 = pneg %p214
        $region46: #{transformer_forward.1} parent=23 // pred_check_branch
          %486 = sbr.rel (%p484) target = $region48
        $region47: #{transformer_forward.1} parent=23 // pred_region
          %p487 = scmp.lt.s32.totalorder %s22, 1
          %s488 = scalar_select %p487, %s22, 1
          %s489 = smul.addr %s488, 8
          %s490 = smul.addr %s489, 4
          %s491 = scalar_lea.vmem %s7, %s490
        $region48: #{transformer_forward.1} parent=23 // pred_fallthru
          _
        // Predicated region
        $region49: #{transformer_forward.1} parent=23 // pred_check
          %p492 = pneg %p240
        $region50: #{transformer_forward.1} parent=23 // pred_check_branch
          %494 = sbr.rel (%p492) target = $region52
        $region51: #{transformer_forward.1} parent=23 // pred_region
          %p495 = scmp.lt.s32.totalorder %s22, 1
          %s496 = scalar_select %p495, %s22, 1
          %s497 = scalar_lea.vmem %s8, %s496
        $region52: #{transformer_forward.1} parent=23 // pred_fallthru
          _
        // Predicated region
        $region53: #{transformer_forward.1} parent=23 // pred_check
          %p498 = pneg %p266
        $region54: #{transformer_forward.1} parent=23 // pred_check_branch
          %500 = sbr.rel (%p498) target = $region56
        $region55: #{transformer_forward.1} parent=23 // pred_region
          %p501 = scmp.lt.s32.totalorder %s22, 1
          %s502 = scalar_select %p501, %s22, 1
          %s503 = scalar_lea.vmem %s9, %s502
        $region56: #{transformer_forward.1} parent=23 // pred_fallthru
          _
        // Predicated region
        $region57: #{transformer_forward.1} parent=23 // pred_check
          %p504 = pneg %p292
        $region58: #{transformer_forward.1} parent=23 // pred_check_branch
          %506 = sbr.rel (%p504) target = $region60
        $region59: #{transformer_forward.1} parent=23 // pred_region
          %p507 = scmp.lt.s32.totalorder %s22, 1
          %s508 = scalar_select %p507, %s22, 1
          %s509 = scalar_lea.vmem %s10, %s508
        $region60: #{transformer_forward.1} parent=23 // pred_fallthru
          _
        // Predicated region
        $region61: #{transformer_forward.1} parent=23 // pred_check
          %p510 = pneg %p318
        $region62: #{transformer_forward.1} parent=23 // pred_check_branch
          %512 = sbr.rel (%p510) target = $region64
        $region63: #{transformer_forward.1} parent=23 // pred_region
          %p513 = scmp.lt.s32.totalorder %s22, 1
          %s514 = scalar_select %p513, %s22, 1
          %s515 = smul.addr %s514, 4
          %s516 = smul.addr %s515, 4
          %s517 = scalar_lea.vmem %s11, %s516
        $region64: #{transformer_forward.1} parent=23 // pred_fallthru
          _
        // Predicated region
        $region65: #{transformer_forward.1} parent=23 // pred_check
          %p518 = pneg %p344
        $region66: #{transformer_forward.1} parent=23 // pred_check_branch
          %520 = sbr.rel (%p518) target = $region68
        $region67: #{transformer_forward.1} parent=23 // pred_region
          %p521 = scmp.lt.s32.totalorder %s22, 1
          %s522 = scalar_select %p521, %s22, 1
          %s523 = scalar_lea.vmem %s12, %s522
        $region68: #{transformer_forward.1} parent=23 // pred_fallthru
          _
        // Predicated region
        $region69: #{transformer_forward.1} parent=23 // pred_check
          %p524 = pneg %p370
        $region70: #{transformer_forward.1} parent=23 // pred_check_branch
          %526 = sbr.rel (%p524) target = $region72
        $region71: #{transformer_forward.1} parent=23 // pred_region
          %p527 = scmp.lt.s32.totalorder %s22, 1
          %s528 = scalar_select %p527, %s22, 1
          %s529 = smul.addr %s528, 8
          %s530 = smul.addr %s529, 4
          %s531 = scalar_lea.vmem %s13, %s530
        $region72: #{transformer_forward.1} parent=23 // pred_fallthru
          _
        // Predicated region
        $region73: #{transformer_forward.1} parent=23 // pred_check
          %p532 = pneg %p396
        $region74: #{transformer_forward.1} parent=23 // pred_check_branch
          %534 = sbr.rel (%p532) target = $region76
        $region75: #{transformer_forward.1} parent=23 // pred_region
          %p535 = scmp.lt.s32.totalorder %s22, 1
          %s536 = scalar_select %p535, %s22, 1
          %s537 = scalar_lea.vmem %s14, %s536
        $region76: #{transformer_forward.1} parent=23 // pred_fallthru
          _
      $region24: #{transformer_forward.1} parent=5 // pred_fallthru
        _
      %p538 = scmp.le.s32.totalorder 1, %s22
      %p539 = scmp.lt.s32.totalorder %s22, 3
      %p540 = pnand %p538, %p539
      %p541 = pneg %p540
      // Predicated region
      $region77: #{transformer_forward.1} parent=5 // pred_check
        _
      $region78: #{transformer_forward.1} parent=5 // pred_check_branch
        %543 = sbr.rel (%p540) target = $region80
      $region79: #{transformer_forward.1} parent=5 // pred_region
        %s544 = ssub.s32 %s22, 1
        %p545 = pneg %p43
        %p546 = pneg %p40
        %p547 = pneg %p64
        %p548 = pneg %p61
        %p549 = scmp.lt.s32.totalorder %s27, 1
        %s550 = scalar_select %p549, %s27, 1
        %s551 = scalar_lea.vmem %s2, %s550
        %p552 = pneg %p90
        %p553 = pneg %p87
        %p554 = scmp.lt.s32.totalorder %s27, 1
        %s555 = scalar_select %p554, %s27, 1
        %s556 = scalar_lea.vmem %s3, %s555
        %p557 = pneg %p116
        %p558 = pneg %p113
        %p559 = scmp.lt.s32.totalorder %s27, 1
        %s560 = scalar_select %p559, %s27, 1
        %s561 = smul.addr %s560, 16
        %s562 = smul.addr %s561, 4
        %s563 = scalar_lea.vmem %s4, %s562
        %p564 = pneg %p142
        %p565 = pneg %p139
        %p566 = scmp.lt.s32.totalorder %s27, 1
        %s567 = scalar_select %p566, %s27, 1
        %s568 = smul.addr %s567, 16
        %s569 = smul.addr %s568, 4
        %s570 = scalar_lea.vmem %s5, %s569
        %p571 = pneg %p168
        %p572 = pneg %p165
        %p573 = scmp.lt.s32.totalorder %s27, 1
        %s574 = scalar_select %p573, %s27, 1
        %s575 = smul.addr %s574, 16
        %s576 = smul.addr %s575, 4
        %s577 = scalar_lea.vmem %s6, %s576
        %p578 = pneg %p194
        %p579 = pneg %p191
        %p580 = scmp.lt.s32.totalorder %s27, 1
        %s581 = scalar_select %p580, %s27, 1
        %s582 = smul.addr %s581, 8
        %s583 = smul.addr %s582, 4
        %s584 = scalar_lea.vmem %s7, %s583
        %p585 = pneg %p220
        %p586 = pneg %p217
        %p587 = scmp.lt.s32.totalorder %s27, 1
        %s588 = scalar_select %p587, %s27, 1
        %s589 = scalar_lea.vmem %s8, %s588
        %p590 = pneg %p246
        %p591 = pneg %p243
        %p592 = scmp.lt.s32.totalorder %s27, 1
        %s593 = scalar_select %p592, %s27, 1
        %s594 = scalar_lea.vmem %s9, %s593
        %p595 = pneg %p272
        %p596 = pneg %p269
        %p597 = scmp.lt.s32.totalorder %s27, 1
        %s598 = scalar_select %p597, %s27, 1
        %s599 = scalar_lea.vmem %s10, %s598
        %p600 = pneg %p298
        %p601 = pneg %p295
        %p602 = scmp.lt.s32.totalorder %s27, 1
        %s603 = scalar_select %p602, %s27, 1
        %s604 = smul.addr %s603, 4
        %s605 = smul.addr %s604, 4
        %s606 = scalar_lea.vmem %s11, %s605
        %p607 = pneg %p324
        %p608 = pneg %p321
        %p609 = scmp.lt.s32.totalorder %s27, 1
        %s610 = scalar_select %p609, %s27, 1
        %s611 = scalar_lea.vmem %s12, %s610
        %p612 = pneg %p350
        %p613 = pneg %p347
        %p614 = scmp.lt.s32.totalorder %s27, 1
        %s615 = scalar_select %p614, %s27, 1
        %s616 = smul.addr %s615, 8
        %s617 = smul.addr %s616, 4
        %s618 = scalar_lea.vmem %s13, %s617
        %p619 = pneg %p376
        %p620 = pneg %p373
        %p621 = scmp.lt.s32.totalorder %s27, 1
        %s622 = scalar_select %p621, %s27, 1
        %s623 = scalar_lea.vmem %s14, %s622
        %p624 = pneg %p402
        %p625 = pneg %p399
        %p626 = pneg %p423
        %p627 = pneg %p420
        %p628 = scmp.lt.s32.totalorder %s27, 1
        %s629 = scalar_select %p628, %s27, 1
        %s630 = scalar_lea.vmem %s2, %s629
        %p631 = scmp.lt.s32.totalorder %s27, 1
        %s632 = scalar_select %p631, %s27, 1
        %s633 = scalar_lea.vmem %s3, %s632
        %p634 = scmp.lt.s32.totalorder %s27, 1
        %s635 = scalar_select %p634, %s27, 1
        %s636 = smul.addr %s635, 16
        %s637 = smul.addr %s636, 4
        %s638 = scalar_lea.vmem %s4, %s637
        %p639 = scmp.lt.s32.totalorder %s27, 1
        %s640 = scalar_select %p639, %s27, 1
        %s641 = smul.addr %s640, 16
        %s642 = smul.addr %s641, 4
        %s643 = scalar_lea.vmem %s5, %s642
        %p644 = scmp.lt.s32.totalorder %s27, 1
        %s645 = scalar_select %p644, %s27, 1
        %s646 = smul.addr %s645, 16
        %s647 = smul.addr %s646, 4
        %s648 = scalar_lea.vmem %s6, %s647
        %p649 = scmp.lt.s32.totalorder %s27, 1
        %s650 = scalar_select %p649, %s27, 1
        %s651 = smul.addr %s650, 8
        %s652 = smul.addr %s651, 4
        %s653 = scalar_lea.vmem %s7, %s652
        %p654 = scmp.lt.s32.totalorder %s27, 1
        %s655 = scalar_select %p654, %s27, 1
        %s656 = scalar_lea.vmem %s8, %s655
        %p657 = scmp.lt.s32.totalorder %s27, 1
        %s658 = scalar_select %p657, %s27, 1
        %s659 = scalar_lea.vmem %s9, %s658
        %p660 = scmp.lt.s32.totalorder %s27, 1
        %s661 = scalar_select %p660, %s27, 1
        %s662 = scalar_lea.vmem %s10, %s661
        %p663 = scmp.lt.s32.totalorder %s27, 1
        %s664 = scalar_select %p663, %s27, 1
        %s665 = smul.addr %s664, 4
        %s666 = smul.addr %s665, 4
        %s667 = scalar_lea.vmem %s11, %s666
        %p668 = scmp.lt.s32.totalorder %s27, 1
        %s669 = scalar_select %p668, %s27, 1
        %s670 = scalar_lea.vmem %s12, %s669
        %p671 = scmp.lt.s32.totalorder %s27, 1
        %s672 = scalar_select %p671, %s27, 1
        %s673 = smul.addr %s672, 8
        %s674 = smul.addr %s673, 4
        %s675 = scalar_lea.vmem %s13, %s674
        %p676 = scmp.lt.s32.totalorder %s27, 1
        %s677 = scalar_select %p676, %s27, 1
        %s678 = scalar_lea.vmem %s14, %s677
        %p680 = scmp.eq.s32.totalorder %s27, 0
        // Predicated region
        $region81: #{transformer_forward.1} parent=79 // pred_check
          %p681 = pneg %p680
        $region82: #{transformer_forward.1} parent=79 // pred_check_branch
          %683 = sbr.rel (%p681) target = $region84
        $region83: #{transformer_forward.1} parent=79 // pred_region
          %v684 = vld [vmem:[%s0] sm:$0xff]
          %v685 = vld [vmem:[%s0 + $0x8] sm:$0xff]
          %vm686 = vcmask 261120
          %687 = vst.msk [vmem:[#allocation2] sm:$0xff] %vm686, %v684
          %688 = vst.msk [vmem:[#allocation2 + $0x8] sm:$0xff] %vm686, %v685
        $region84: #{transformer_forward.1} parent=79 // pred_fallthru
          _
        %v689 = vld [vmem:[#allocation2] sm:$0xff]
        %v690 = vld [vmem:[#allocation2 + $0x8] sm:$0xff]
        %v691 = vld [vmem:[%s1] sm:$0xff]
        %v692 = vld [vmem:[%s1 + $0x8] sm:$0xff]
        %v693 = vld [vmem:[%s630] sm:$0x1]
        %v694 = vld [vmem:[%s633] sm:$0x1]
        %vm695 = vcmask 261120
        %v696 = vsel %vm695, %v689, 0.0
        %697 = vadd.xlane.f32.xlu0 %v696
        %v698 = vpop.xlane.xlu0 %697
        %v699 = vsel %vm695, %v690, 0.0
        %700 = vadd.xlane.f32.xlu0 %v699
        %v701 = vpop.xlane.xlu0 %700
        %v702 = vrcp.pop 32.0
        %v703 = vmul.f32 %v698, %v702
        %v704 = vmul.f32 %v701, %v702
        %v705 = vsub.f32 %v689, %v703
        %v706 = vsub.f32 %v690, %v704
        %v707 = vmul.f32 %v705, %v705
        %v708 = vmul.f32 %v706, %v706
        %v709 = vsel %vm695, %v707, 0.0
        %710 = vadd.xlane.f32.xlu0 %v709
        %v711 = vpop.xlane.xlu0 %710
        %v712 = vsel %vm695, %v708, 0.0
        %713 = vadd.xlane.f32.xlu0 %v712
        %v714 = vpop.xlane.xlu0 %713
        %v715 = vmul.f32 %v711, %v702
        %v716 = vmul.f32 %v714, %v702
        %v717 = vadd.f32 %v715, 1e-05
        %v718 = vadd.f32 %v716, 1e-05
        %v719 = vrsqrt.pop %v717
        %v720 = vrsqrt.pop %v718
        %v721 = vmul.f32 %v705, %v719
        %v722 = vmul.f32 %v706, %v720
        %v724 = vlaneseq
        %v725 = vshrl.u32 %v724, 7
        %v726 = vsub.s32 0, %v725
        %v727 = vrot.slane %v693, %v726
        %v729 = vmul.f32 %v721, %v727
        %v730 = vmul.f32 %v722, %v727
        %v732 = vlaneseq
        %v733 = vshrl.u32 %v732, 7
        %v734 = vsub.s32 0, %v733
        %v735 = vrot.slane %v694, %v734
        %v737 = vadd.f32 %v729, %v735
        %v738 = vadd.f32 %v730, %v735
        %v739 = vpack.c.bf16 %v738, %v737
        %v740 = vld [vmem:[%s638] sm:$0xf]
        %v741 = vld [vmem:[%s638 + $0x4] sm:$0xf]
        %v742 = vld [vmem:[%s638 + $0x8] sm:$0xf]
        %v743 = vld [vmem:[%s638 + $0xc] sm:$0xf]
        %v744 = vld [vmem:[%s643] sm:$0xf]
        %v745 = vld [vmem:[%s643 + $0x4] sm:$0xf]
        %v746 = vld [vmem:[%s643 + $0x8] sm:$0xf]
        %v747 = vld [vmem:[%s643 + $0xc] sm:$0xf]
        %v748 = vld [vmem:[%s648] sm:$0xf]
        %v749 = vld [vmem:[%s648 + $0x4] sm:$0xf]
        %v750 = vld [vmem:[%s648 + $0x8] sm:$0xf]
        %v751 = vld [vmem:[%s648 + $0xc] sm:$0xf]
        %v752 = vld [vmem:[%s653] sm:$0xf]
        %v753 = vld [vmem:[%s653 + $0x4] sm:$0xf]
        %v758 = vunpack.c.l.b16 %v740
        %v759 = vunpack.c.l.b16 %v741
        %v760 = vunpack.c.l.b16 %v742
        %v761 = vunpack.c.l.b16 %v743
        %v762 = vpack.c.b16 %v759, %v758
        %v763 = vpack.c.b16 %v761, %v760
        %v767 = vsel %vm695, %v739, 0
        %769 = vmatprep.subr.bf16.mxu0 0
        %770 = vmatpush1.bf16.msra.mxu0 0
        %771 = vmatprep.subr.bf16.mxu0 0
        %772 = vmatpush1.bf16.msra.mxu0 0
        %773 = vmatprep.subr.bf16.mxu0 0
        %774 = vmatpush1.bf16.msra.mxu0 0
        %775 = vmatprep.subr.bf16.mxu0 0
        %776 = vmatpush1.bf16.msra.mxu0 0
        %777 = vmatprep.subr.bf16.mxu0 0
        %778 = vmatpush1.bf16.msra.mxu0 0
        %779 = vmatprep.subr.bf16.mxu0 0
        %780 = vmatpush1.bf16.msra.mxu0 0
        %781 = vmatprep.subr.bf16.mxu0 0
        %782 = vmatpush1.bf16.msra.mxu0 %v763
        %783 = vmatprep.subr.bf16.mxu0 0
        %784 = vmatpush1.bf16.msra.mxu0 %v762
        %785 = vmatprep.subr.bf16.mxu0 0
        %786 = vmatpush2.bf16.msra.mxu0 0
        %787 = vmatprep.subr.bf16.mxu0 0
        %788 = vmatpush2.bf16.msra.mxu0 0
        %789 = vmatprep.subr.bf16.mxu0 0
        %790 = vmatpush2.bf16.msra.mxu0 0
        %791 = vmatprep.subr.bf16.mxu0 0
        %792 = vmatpush2.bf16.msra.mxu0 0
        %793 = vmatprep.subr.bf16.mxu0 0
        %794 = vmatpush2.bf16.msra.mxu0 0
        %795 = vmatprep.subr.bf16.mxu0 0
        %796 = vmatpush2.bf16.msra.mxu0 0
        %797 = vmatprep.subr.bf16.mxu0 0
        %798 = vmatpush2.bf16.msra.mxu0 0
        %799 = vmatprep.subr.bf16.mxu0 0
        %800 = vmatpush2.bf16.msra.mxu0 0
        %801 = vmatprep.mubr.bf16.mxu0 0
        %802 = vmatmul.mubr.bf16.gmra.mxu0 %v767
        %v803 = vpop.f32.mrf.mxu0
        %v804 = vadd.f32 0.0, %v803
        %v805 = vpop.f32.mrf.mxu0
        %v806 = vpop.f32.mrf.mxu0
        %v807 = vadd.f32 0.0, %v806
        %v808 = vpop.f32.mrf.mxu0
        %809 = vdwg.mxu0
        %v810 = vpack.c.bf16 %v807, %v804
        %v815 = vunpack.c.l.b16 %v744
        %v816 = vunpack.c.l.b16 %v745
        %v817 = vunpack.c.l.b16 %v746
        %v818 = vunpack.c.l.b16 %v747
        %v819 = vpack.c.b16 %v816, %v815
        %v820 = vpack.c.b16 %v818, %v817
        %823 = vmatprep.subr.bf16.mxu0 0
        %824 = vmatpush1.bf16.msra.mxu0 0
        %825 = vmatprep.subr.bf16.mxu0 0
        %826 = vmatpush1.bf16.msra.mxu0 0
        %827 = vmatprep.subr.bf16.mxu0 0
        %828 = vmatpush1.bf16.msra.mxu0 0
        %829 = vmatprep.subr.bf16.mxu0 0
        %830 = vmatpush1.bf16.msra.mxu0 0
        %831 = vmatprep.subr.bf16.mxu0 0
        %832 = vmatpush1.bf16.msra.mxu0 0
        %833 = vmatprep.subr.bf16.mxu0 0
        %834 = vmatpush1.bf16.msra.mxu0 0
        %835 = vmatprep.subr.bf16.mxu0 0
        %836 = vmatpush1.bf16.msra.mxu0 %v820
        %837 = vmatprep.subr.bf16.mxu0 0
        %838 = vmatpush1.bf16.msra.mxu0 %v819
        %839 = vmatprep.subr.bf16.mxu0 0
        %840 = vmatpush2.bf16.msra.mxu0 0
        %841 = vmatprep.subr.bf16.mxu0 0
        %842 = vmatpush2.bf16.msra.mxu0 0
        %843 = vmatprep.subr.bf16.mxu0 0
        %844 = vmatpush2.bf16.msra.mxu0 0
        %845 = vmatprep.subr.bf16.mxu0 0
        %846 = vmatpush2.bf16.msra.mxu0 0
        %847 = vmatprep.subr.bf16.mxu0 0
        %848 = vmatpush2.bf16.msra.mxu0 0
        %849 = vmatprep.subr.bf16.mxu0 0
        %850 = vmatpush2.bf16.msra.mxu0 0
        %851 = vmatprep.subr.bf16.mxu0 0
        %852 = vmatpush2.bf16.msra.mxu0 0
        %853 = vmatprep.subr.bf16.mxu0 0
        %854 = vmatpush2.bf16.msra.mxu0 0
        %855 = vmatprep.mubr.bf16.mxu0 0
        %856 = vmatmul.mubr.bf16.gmra.mxu0 %v767
        %v857 = vpop.f32.mrf.mxu0
        %v858 = vadd.f32 0.0, %v857
        %v859 = vpop.f32.mrf.mxu0
        %v860 = vpop.f32.mrf.mxu0
        %v861 = vadd.f32 0.0, %v860
        %v862 = vpop.f32.mrf.mxu0
        %863 = vdwg.mxu0
        %v864 = vpack.c.bf16 %v861, %v858
        %v869 = vunpack.c.l.b16 %v748
        %v870 = vunpack.c.l.b16 %v749
        %v871 = vunpack.c.l.b16 %v750
        %v872 = vunpack.c.l.b16 %v751
        %v873 = vpack.c.b16 %v870, %v869
        %v874 = vpack.c.b16 %v872, %v871
        %877 = vmatprep.subr.bf16.mxu0 0
        %878 = vmatpush1.bf16.msra.mxu0 0
        %879 = vmatprep.subr.bf16.mxu0 0
        %880 = vmatpush1.bf16.msra.mxu0 0
        %881 = vmatprep.subr.bf16.mxu0 0
        %882 = vmatpush1.bf16.msra.mxu0 0
        %883 = vmatprep.subr.bf16.mxu0 0
        %884 = vmatpush1.bf16.msra.mxu0 0
        %885 = vmatprep.subr.bf16.mxu0 0
        %886 = vmatpush1.bf16.msra.mxu0 0
        %887 = vmatprep.subr.bf16.mxu0 0
        %888 = vmatpush1.bf16.msra.mxu0 0
        %889 = vmatprep.subr.bf16.mxu0 0
        %890 = vmatpush1.bf16.msra.mxu0 %v874
        %891 = vmatprep.subr.bf16.mxu0 0
        %892 = vmatpush1.bf16.msra.mxu0 %v873
        %893 = vmatprep.subr.bf16.mxu0 0
        %894 = vmatpush2.bf16.msra.mxu0 0
        %895 = vmatprep.subr.bf16.mxu0 0
        %896 = vmatpush2.bf16.msra.mxu0 0
        %897 = vmatprep.subr.bf16.mxu0 0
        %898 = vmatpush2.bf16.msra.mxu0 0
        %899 = vmatprep.subr.bf16.mxu0 0
        %900 = vmatpush2.bf16.msra.mxu0 0
        %901 = vmatprep.subr.bf16.mxu0 0
        %902 = vmatpush2.bf16.msra.mxu0 0
        %903 = vmatprep.subr.bf16.mxu0 0
        %904 = vmatpush2.bf16.msra.mxu0 0
        %905 = vmatprep.subr.bf16.mxu0 0
        %906 = vmatpush2.bf16.msra.mxu0 0
        %907 = vmatprep.subr.bf16.mxu0 0
        %908 = vmatpush2.bf16.msra.mxu0 0
        %909 = vmatprep.mubr.bf16.mxu0 0
        %910 = vmatmul.mubr.bf16.gmra.mxu0 %v767
        %v911 = vpop.f32.mrf.mxu0
        %v912 = vadd.f32 0.0, %v911
        %v913 = vpop.f32.mrf.mxu0
        %v914 = vpop.f32.mrf.mxu0
        %v915 = vadd.f32 0.0, %v914
        %v916 = vpop.f32.mrf.mxu0
        %917 = vdwg.mxu0
        %v918 = vpack.c.bf16 %v915, %v912
        %vm919 = vcmask 130048
        %v921 = vsel %vm919, %v810, 0
        %v924 = vsel %vm919, %v864, 0
        %926 = vmatprep.subr.bf16.mxu0 0
        %927 = vmatpush1.bf16.xpose.msra.mxu0 0
        %928 = vmatprep.subr.bf16.mxu0 0
        %929 = vmatpush1.bf16.xpose.msra.mxu0 0
        %930 = vmatprep.subr.bf16.mxu0 0
        %931 = vmatpush1.bf16.xpose.msra.mxu0 0
        %932 = vmatprep.subr.bf16.mxu0 0
        %933 = vmatpush1.bf16.xpose.msra.mxu0 0
        %934 = vmatprep.subr.bf16.mxu0 0
        %935 = vmatpush1.bf16.xpose.msra.mxu0 0
        %936 = vmatprep.subr.bf16.mxu0 0
        %937 = vmatpush1.bf16.xpose.msra.mxu0 0
        %938 = vmatprep.subr.bf16.mxu0 0
        %939 = vmatpush1.bf16.xpose.msra.mxu0 0
        %940 = vmatprep.subr.bf16.mxu0 0
        %941 = vmatpush1.bf16.xpose.msra.mxu0 %v924
        %942 = vmatprep.subr.bf16.mxu0 0
        %943 = vmatpush2.bf16.xpose.msra.mxu0 0
        %944 = vmatprep.subr.bf16.mxu0 0
        %945 = vmatpush2.bf16.xpose.msra.mxu0 0
        %946 = vmatprep.subr.bf16.mxu0 0
        %947 = vmatpush2.bf16.xpose.msra.mxu0 0
        %948 = vmatprep.subr.bf16.mxu0 0
        %949 = vmatpush2.bf16.xpose.msra.mxu0 0
        %950 = vmatprep.subr.bf16.mxu0 0
        %951 = vmatpush2.bf16.xpose.msra.mxu0 0
        %952 = vmatprep.subr.bf16.mxu0 0
        %953 = vmatpush2.bf16.xpose.msra.mxu0 0
        %954 = vmatprep.subr.bf16.mxu0 0
        %955 = vmatpush2.bf16.xpose.msra.mxu0 0
        %956 = vmatprep.subr.bf16.mxu0 0
        %957 = vmatpush2.bf16.xpose.msra.mxu0 0
        %958 = vmatprep.mubr.bf16.mxu0 0
        %959 = vmatmul.mubr.bf16.gmra.mxu0 %v921
        %v960 = vpop.f32.mrf.mxu0
        %v961 = vadd.f32 %v691, %v960
        %v962 = vpop.f32.mrf.mxu0
        %v963 = vpop.f32.mrf.mxu0
        %v964 = vadd.f32 %v692, %v963
        %v965 = vpop.f32.mrf.mxu0
        %966 = vdwg.mxu0
        %v967 = vsel %vm919, %v961, -inf
        %968 = vmax.xlane.f32.xlu0 %v967
        %v969 = vpop.xlane.xlu0 %968
        %v970 = vsel %vm919, %v964, -inf
        %971 = vmax.xlane.f32.xlu0 %v970
        %v972 = vpop.xlane.xlu0 %971
        %v973 = vsub.f32 %v961, %v969
        %v974 = vsub.f32 %v964, %v972
        %v975 = vmul.f32 %v973, 1.442695
        %v976 = vpow.pop %v975
        %v977 = vmul.f32 %v974, 1.442695
        %v978 = vpow.pop %v977
        %v979 = vsel %vm919, %v976, 0.0
        %980 = vadd.xlane.f32.xlu0 %v979
        %v981 = vpop.xlane.xlu0 %980
        %v982 = vsel %vm919, %v978, 0.0
        %983 = vadd.xlane.f32.xlu0 %v982
        %v984 = vpop.xlane.xlu0 %983
        %v985 = vrcp.pop %v981
        %v986 = vrcp.pop %v984
        %v987 = vmul.f32 %v976, %v985
        %v988 = vmul.f32 %v978, %v986
        %v989 = vpack.c.bf16 %v988, %v987
        %v991 = vsel %vm919, %v989, 0
        %993 = vmatprep.subr.bf16.mxu0 0
        %994 = vmatpush1.bf16.msra.mxu0 0
        %995 = vmatprep.subr.bf16.mxu0 0
        %996 = vmatpush1.bf16.msra.mxu0 0
        %997 = vmatprep.subr.bf16.mxu0 0
        %998 = vmatpush1.bf16.msra.mxu0 0
        %999 = vmatprep.subr.bf16.mxu0 0
        %1000 = vmatpush1.bf16.msra.mxu0 0
        %1001 = vmatprep.subr.bf16.mxu0 0
        %1002 = vmatpush1.bf16.msra.mxu0 0
        %1003 = vmatprep.subr.bf16.mxu0 0
        %1004 = vmatpush1.bf16.msra.mxu0 0
        %1005 = vmatprep.subr.bf16.mxu0 0
        %1006 = vmatpush1.bf16.msra.mxu0 0
        %1007 = vmatprep.subr.bf16.mxu0 0
        %1008 = vmatpush1.bf16.msra.mxu0 %v918
        %1009 = vmatprep.subr.bf16.mxu0 0
        %1010 = vmatpush2.bf16.msra.mxu0 0
        %1011 = vmatprep.subr.bf16.mxu0 0
        %1012 = vmatpush2.bf16.msra.mxu0 0
        %1013 = vmatprep.subr.bf16.mxu0 0
        %1014 = vmatpush2.bf16.msra.mxu0 0
        %1015 = vmatprep.subr.bf16.mxu0 0
        %1016 = vmatpush2.bf16.msra.mxu0 0
        %1017 = vmatprep.subr.bf16.mxu0 0
        %1018 = vmatpush2.bf16.msra.mxu0 0
        %1019 = vmatprep.subr.bf16.mxu0 0
        %1020 = vmatpush2.bf16.msra.mxu0 0
        %1021 = vmatprep.subr.bf16.mxu0 0
        %1022 = vmatpush2.bf16.msra.mxu0 0
        %1023 = vmatprep.subr.bf16.mxu0 0
        %1024 = vmatpush2.bf16.msra.mxu0 0
        %1025 = vmatprep.mubr.bf16.mxu0 0
        %1026 = vmatmul.mubr.bf16.gmra.mxu0 %v991
        %v1027 = vpop.f32.mrf.mxu0
        %v1028 = vadd.f32 0.0, %v1027
        %v1029 = vpop.f32.mrf.mxu0
        %v1030 = vpop.f32.mrf.mxu0
        %v1031 = vadd.f32 0.0, %v1030
        %v1032 = vpop.f32.mrf.mxu0
        %1033 = vdwg.mxu0
        %v1034 = vpack.c.bf16 %v1031, %v1028
        %s1035 = scalar_lea.vmem %s638, 16
        %v1036 = vld [vmem:[%s1035] sm:$0xf]
        %v1037 = vld [vmem:[%s1035 + $0x4] sm:$0xf]
        %v1038 = vld [vmem:[%s1035 + $0x8] sm:$0xf]
        %v1039 = vld [vmem:[%s1035 + $0xc] sm:$0xf]
        %s1040 = scalar_lea.vmem %s643, 16
        %v1041 = vld [vmem:[%s1040] sm:$0xf]
        %v1042 = vld [vmem:[%s1040 + $0x4] sm:$0xf]
        %v1043 = vld [vmem:[%s1040 + $0x8] sm:$0xf]
        %v1044 = vld [vmem:[%s1040 + $0xc] sm:$0xf]
        %s1045 = scalar_lea.vmem %s648, 16
        %v1046 = vld [vmem:[%s1045] sm:$0xf]
        %v1047 = vld [vmem:[%s1045 + $0x4] sm:$0xf]
        %v1048 = vld [vmem:[%s1045 + $0x8] sm:$0xf]
        %v1049 = vld [vmem:[%s1045 + $0xc] sm:$0xf]
        %s1050 = scalar_lea.vmem %s653, 8
        %v1051 = vld [vmem:[%s1050] sm:$0xf]
        %v1052 = vld [vmem:[%s1050 + $0x4] sm:$0xf]
        %v1057 = vunpack.c.l.b16 %v1036
        %v1058 = vunpack.c.l.b16 %v1037
        %v1059 = vunpack.c.l.b16 %v1038
        %v1060 = vunpack.c.l.b16 %v1039
        %v1061 = vpack.c.b16 %v1058, %v1057
        %v1062 = vpack.c.b16 %v1060, %v1059
        %1065 = vmatprep.subr.bf16.mxu0 0
        %1066 = vmatpush1.bf16.msra.mxu0 0
        %1067 = vmatprep.subr.bf16.mxu0 0
        %1068 = vmatpush1.bf16.msra.mxu0 0
        %1069 = vmatprep.subr.bf16.mxu0 0
        %1070 = vmatpush1.bf16.msra.mxu0 0
        %1071 = vmatprep.subr.bf16.mxu0 0
        %1072 = vmatpush1.bf16.msra.mxu0 0
        %1073 = vmatprep.subr.bf16.mxu0 0
        %1074 = vmatpush1.bf16.msra.mxu0 0
        %1075 = vmatprep.subr.bf16.mxu0 0
        %1076 = vmatpush1.bf16.msra.mxu0 0
        %1077 = vmatprep.subr.bf16.mxu0 0
        %1078 = vmatpush1.bf16.msra.mxu0 %v1062
        %1079 = vmatprep.subr.bf16.mxu0 0
        %1080 = vmatpush1.bf16.msra.mxu0 %v1061
        %1081 = vmatprep.subr.bf16.mxu0 0
        %1082 = vmatpush2.bf16.msra.mxu0 0
        %1083 = vmatprep.subr.bf16.mxu0 0
        %1084 = vmatpush2.bf16.msra.mxu0 0
        %1085 = vmatprep.subr.bf16.mxu0 0
        %1086 = vmatpush2.bf16.msra.mxu0 0
        %1087 = vmatprep.subr.bf16.mxu0 0
        %1088 = vmatpush2.bf16.msra.mxu0 0
        %1089 = vmatprep.subr.bf16.mxu0 0
        %1090 = vmatpush2.bf16.msra.mxu0 0
        %1091 = vmatprep.subr.bf16.mxu0 0
        %1092 = vmatpush2.bf16.msra.mxu0 0
        %1093 = vmatprep.subr.bf16.mxu0 0
        %1094 = vmatpush2.bf16.msra.mxu0 0
        %1095 = vmatprep.subr.bf16.mxu0 0
        %1096 = vmatpush2.bf16.msra.mxu0 0
        %1097 = vmatprep.mubr.bf16.mxu0 0
        %1098 = vmatmul.mubr.bf16.gmra.mxu0 %v767
        %v1099 = vpop.f32.mrf.mxu0
        %v1100 = vadd.f32 0.0, %v1099
        %v1101 = vpop.f32.mrf.mxu0
        %v1102 = vpop.f32.mrf.mxu0
        %v1103 = vadd.f32 0.0, %v1102
        %v1104 = vpop.f32.mrf.mxu0
        %1105 = vdwg.mxu0
        %v1106 = vpack.c.bf16 %v1103, %v1100
        %v1111 = vunpack.c.l.b16 %v1041
        %v1112 = vunpack.c.l.b16 %v1042
        %v1113 = vunpack.c.l.b16 %v1043
        %v1114 = vunpack.c.l.b16 %v1044
        %v1115 = vpack.c.b16 %v1112, %v1111
        %v1116 = vpack.c.b16 %v1114, %v1113
        %1119 = vmatprep.subr.bf16.mxu0 0
        %1120 = vmatpush1.bf16.msra.mxu0 0
        %1121 = vmatprep.subr.bf16.mxu0 0
        %1122 = vmatpush1.bf16.msra.mxu0 0
        %1123 = vmatprep.subr.bf16.mxu0 0
        %1124 = vmatpush1.bf16.msra.mxu0 0
        %1125 = vmatprep.subr.bf16.mxu0 0
        %1126 = vmatpush1.bf16.msra.mxu0 0
        %1127 = vmatprep.subr.bf16.mxu0 0
        %1128 = vmatpush1.bf16.msra.mxu0 0
        %1129 = vmatprep.subr.bf16.mxu0 0
        %1130 = vmatpush1.bf16.msra.mxu0 0
        %1131 = vmatprep.subr.bf16.mxu0 0
        %1132 = vmatpush1.bf16.msra.mxu0 %v1116
        %1133 = vmatprep.subr.bf16.mxu0 0
        %1134 = vmatpush1.bf16.msra.mxu0 %v1115
        %1135 = vmatprep.subr.bf16.mxu0 0
        %1136 = vmatpush2.bf16.msra.mxu0 0
        %1137 = vmatprep.subr.bf16.mxu0 0
        %1138 = vmatpush2.bf16.msra.mxu0 0
        %1139 = vmatprep.subr.bf16.mxu0 0
        %1140 = vmatpush2.bf16.msra.mxu0 0
        %1141 = vmatprep.subr.bf16.mxu0 0
        %1142 = vmatpush2.bf16.msra.mxu0 0
        %1143 = vmatprep.subr.bf16.mxu0 0
        %1144 = vmatpush2.bf16.msra.mxu0 0
        %1145 = vmatprep.subr.bf16.mxu0 0
        %1146 = vmatpush2.bf16.msra.mxu0 0
        %1147 = vmatprep.subr.bf16.mxu0 0
        %1148 = vmatpush2.bf16.msra.mxu0 0
        %1149 = vmatprep.subr.bf16.mxu0 0
        %1150 = vmatpush2.bf16.msra.mxu0 0
        %1151 = vmatprep.mubr.bf16.mxu0 0
        %1152 = vmatmul.mubr.bf16.gmra.mxu0 %v767
        %v1153 = vpop.f32.mrf.mxu0
        %v1154 = vadd.f32 0.0, %v1153
        %v1155 = vpop.f32.mrf.mxu0
        %v1156 = vpop.f32.mrf.mxu0
        %v1157 = vadd.f32 0.0, %v1156
        %v1158 = vpop.f32.mrf.mxu0
        %1159 = vdwg.mxu0
        %v1160 = vpack.c.bf16 %v1157, %v1154
        %v1165 = vunpack.c.l.b16 %v1046
        %v1166 = vunpack.c.l.b16 %v1047
        %v1167 = vunpack.c.l.b16 %v1048
        %v1168 = vunpack.c.l.b16 %v1049
        %v1169 = vpack.c.b16 %v1166, %v1165
        %v1170 = vpack.c.b16 %v1168, %v1167
        %1173 = vmatprep.subr.bf16.mxu0 0
        %1174 = vmatpush1.bf16.msra.mxu0 0
        %1175 = vmatprep.subr.bf16.mxu0 0
        %1176 = vmatpush1.bf16.msra.mxu0 0
        %1177 = vmatprep.subr.bf16.mxu0 0
        %1178 = vmatpush1.bf16.msra.mxu0 0
        %1179 = vmatprep.subr.bf16.mxu0 0
        %1180 = vmatpush1.bf16.msra.mxu0 0
        %1181 = vmatprep.subr.bf16.mxu0 0
        %1182 = vmatpush1.bf16.msra.mxu0 0
        %1183 = vmatprep.subr.bf16.mxu0 0
        %1184 = vmatpush1.bf16.msra.mxu0 0
        %1185 = vmatprep.subr.bf16.mxu0 0
        %1186 = vmatpush1.bf16.msra.mxu0 %v1170
        %1187 = vmatprep.subr.bf16.mxu0 0
        %1188 = vmatpush1.bf16.msra.mxu0 %v1169
        %1189 = vmatprep.subr.bf16.mxu0 0
        %1190 = vmatpush2.bf16.msra.mxu0 0
        %1191 = vmatprep.subr.bf16.mxu0 0
        %1192 = vmatpush2.bf16.msra.mxu0 0
        %1193 = vmatprep.subr.bf16.mxu0 0
        %1194 = vmatpush2.bf16.msra.mxu0 0
        %1195 = vmatprep.subr.bf16.mxu0 0
        %1196 = vmatpush2.bf16.msra.mxu0 0
        %1197 = vmatprep.subr.bf16.mxu0 0
        %1198 = vmatpush2.bf16.msra.mxu0 0
        %1199 = vmatprep.subr.bf16.mxu0 0
        %1200 = vmatpush2.bf16.msra.mxu0 0
        %1201 = vmatprep.subr.bf16.mxu0 0
        %1202 = vmatpush2.bf16.msra.mxu0 0
        %1203 = vmatprep.subr.bf16.mxu0 0
        %1204 = vmatpush2.bf16.msra.mxu0 0
        %1205 = vmatprep.mubr.bf16.mxu0 0
        %1206 = vmatmul.mubr.bf16.gmra.mxu0 %v767
        %v1207 = vpop.f32.mrf.mxu0
        %v1208 = vadd.f32 0.0, %v1207
        %v1209 = vpop.f32.mrf.mxu0
        %v1210 = vpop.f32.mrf.mxu0
        %v1211 = vadd.f32 0.0, %v1210
        %v1212 = vpop.f32.mrf.mxu0
        %1213 = vdwg.mxu0
        %v1214 = vpack.c.bf16 %v1211, %v1208
        %v1216 = vsel %vm919, %v1106, 0
        %v1219 = vsel %vm919, %v1160, 0
        %1221 = vmatprep.subr.bf16.mxu0 0
        %1222 = vmatpush1.bf16.xpose.msra.mxu0 0
        %1223 = vmatprep.subr.bf16.mxu0 0
        %1224 = vmatpush1.bf16.xpose.msra.mxu0 0
        %1225 = vmatprep.subr.bf16.mxu0 0
        %1226 = vmatpush1.bf16.xpose.msra.mxu0 0
        %1227 = vmatprep.subr.bf16.mxu0 0
        %1228 = vmatpush1.bf16.xpose.msra.mxu0 0
        %1229 = vmatprep.subr.bf16.mxu0 0
        %1230 = vmatpush1.bf16.xpose.msra.mxu0 0
        %1231 = vmatprep.subr.bf16.mxu0 0
        %1232 = vmatpush1.bf16.xpose.msra.mxu0 0
        %1233 = vmatprep.subr.bf16.mxu0 0
        %1234 = vmatpush1.bf16.xpose.msra.mxu0 0
        %1235 = vmatprep.subr.bf16.mxu0 0
        %1236 = vmatpush1.bf16.xpose.msra.mxu0 %v1219
        %1237 = vmatprep.subr.bf16.mxu0 0
        %1238 = vmatpush2.bf16.xpose.msra.mxu0 0
        %1239 = vmatprep.subr.bf16.mxu0 0
        %1240 = vmatpush2.bf16.xpose.msra.mxu0 0
        %1241 = vmatprep.subr.bf16.mxu0 0
        %1242 = vmatpush2.bf16.xpose.msra.mxu0 0
        %1243 = vmatprep.subr.bf16.mxu0 0
        %1244 = vmatpush2.bf16.xpose.msra.mxu0 0
        %1245 = vmatprep.subr.bf16.mxu0 0
        %1246 = vmatpush2.bf16.xpose.msra.mxu0 0
        %1247 = vmatprep.subr.bf16.mxu0 0
        %1248 = vmatpush2.bf16.xpose.msra.mxu0 0
        %1249 = vmatprep.subr.bf16.mxu0 0
        %1250 = vmatpush2.bf16.xpose.msra.mxu0 0
        %1251 = vmatprep.subr.bf16.mxu0 0
        %1252 = vmatpush2.bf16.xpose.msra.mxu0 0
        %1253 = vmatprep.mubr.bf16.mxu0 0
        %1254 = vmatmul.mubr.bf16.gmra.mxu0 %v1216
        %v1255 = vpop.f32.mrf.mxu0
        %v1256 = vadd.f32 %v691, %v1255
        %v1257 = vpop.f32.mrf.mxu0
        %v1258 = vpop.f32.mrf.mxu0
        %v1259 = vadd.f32 %v692, %v1258
        %v1260 = vpop.f32.mrf.mxu0
        %1261 = vdwg.mxu0
        %v1262 = vsel %vm919, %v1256, -inf
        %1263 = vmax.xlane.f32.xlu0 %v1262
        %v1264 = vpop.xlane.xlu0 %1263
        %v1265 = vsel %vm919, %v1259, -inf
        %1266 = vmax.xlane.f32.xlu0 %v1265
        %v1267 = vpop.xlane.xlu0 %1266
        %v1268 = vsub.f32 %v1256, %v1264
        %v1269 = vsub.f32 %v1259, %v1267
        %v1270 = vmul.f32 %v1268, 1.442695
        %v1271 = vpow.pop %v1270
        %v1272 = vmul.f32 %v1269, 1.442695
        %v1273 = vpow.pop %v1272
        %v1274 = vsel %vm919, %v1271, 0.0
        %1275 = vadd.xlane.f32.xlu0 %v1274
        %v1276 = vpop.xlane.xlu0 %1275
        %v1277 = vsel %vm919, %v1273, 0.0
        %1278 = vadd.xlane.f32.xlu0 %v1277
        %v1279 = vpop.xlane.xlu0 %1278
        %v1280 = vrcp.pop %v1276
        %v1281 = vrcp.pop %v1279
        %v1282 = vmul.f32 %v1271, %v1280
        %v1283 = vmul.f32 %v1273, %v1281
        %v1284 = vpack.c.bf16 %v1283, %v1282
        %v1286 = vsel %vm919, %v1284, 0
        %1288 = vmatprep.subr.bf16.mxu0 0
        %1289 = vmatpush1.bf16.msra.mxu0 0
        %1290 = vmatprep.subr.bf16.mxu0 0
        %1291 = vmatpush1.bf16.msra.mxu0 0
        %1292 = vmatprep.subr.bf16.mxu0 0
        %1293 = vmatpush1.bf16.msra.mxu0 0
        %1294 = vmatprep.subr.bf16.mxu0 0
        %1295 = vmatpush1.bf16.msra.mxu0 0
        %1296 = vmatprep.subr.bf16.mxu0 0
        %1297 = vmatpush1.bf16.msra.mxu0 0
        %1298 = vmatprep.subr.bf16.mxu0 0
        %1299 = vmatpush1.bf16.msra.mxu0 0
        %1300 = vmatprep.subr.bf16.mxu0 0
        %1301 = vmatpush1.bf16.msra.mxu0 0
        %1302 = vmatprep.subr.bf16.mxu0 0
        %1303 = vmatpush1.bf16.msra.mxu0 %v1214
        %1304 = vmatprep.subr.bf16.mxu0 0
        %1305 = vmatpush2.bf16.msra.mxu0 0
        %1306 = vmatprep.subr.bf16.mxu0 0
        %1307 = vmatpush2.bf16.msra.mxu0 0
        %1308 = vmatprep.subr.bf16.mxu0 0
        %1309 = vmatpush2.bf16.msra.mxu0 0
        %1310 = vmatprep.subr.bf16.mxu0 0
        %1311 = vmatpush2.bf16.msra.mxu0 0
        %1312 = vmatprep.subr.bf16.mxu0 0
        %1313 = vmatpush2.bf16.msra.mxu0 0
        %1314 = vmatprep.subr.bf16.mxu0 0
        %1315 = vmatpush2.bf16.msra.mxu0 0
        %1316 = vmatprep.subr.bf16.mxu0 0
        %1317 = vmatpush2.bf16.msra.mxu0 0
        %1318 = vmatprep.subr.bf16.mxu0 0
        %1319 = vmatpush2.bf16.msra.mxu0 0
        %1320 = vmatprep.mubr.bf16.mxu0 0
        %1321 = vmatmul.mubr.bf16.gmra.mxu0 %v1286
        %v1322 = vpop.f32.mrf.mxu0
        %v1323 = vadd.f32 0.0, %v1322
        %v1324 = vpop.f32.mrf.mxu0
        %v1325 = vpop.f32.mrf.mxu0
        %v1326 = vadd.f32 0.0, %v1325
        %v1327 = vpop.f32.mrf.mxu0
        %1328 = vdwg.mxu0
        %v1329 = vpack.c.bf16 %v1326, %v1323
        %v1332 = vunpack.c.l.b16 %v1051
        %v1333 = vunpack.c.l.b16 %v1052
        %v1334 = vpack.c.b16 %v1333, %v1332
        %v1337 = vsel %vm919, %v1329, 0
        %1339 = vmatprep.subr.bf16.mxu0 0
        %1340 = vmatpush1.bf16.msra.mxu0 0
        %1341 = vmatprep.subr.bf16.mxu0 0
        %1342 = vmatpush1.bf16.msra.mxu0 0
        %1343 = vmatprep.subr.bf16.mxu0 0
        %1344 = vmatpush1.bf16.msra.mxu0 0
        %1345 = vmatprep.subr.bf16.mxu0 0
        %1346 = vmatpush1.bf16.msra.mxu0 0
        %1347 = vmatprep.subr.bf16.mxu0 0
        %1348 = vmatpush1.bf16.msra.mxu0 0
        %1349 = vmatprep.subr.bf16.mxu0 0
        %1350 = vmatpush1.bf16.msra.mxu0 0
        %1351 = vmatprep.subr.bf16.mxu0 0
        %1352 = vmatpush1.bf16.msra.mxu0 0
        %1353 = vmatprep.subr.bf16.mxu0 0
        %1354 = vmatpush1.bf16.msra.mxu0 %v1334
        %1355 = vmatprep.subr.bf16.mxu0 0
        %1356 = vmatpush2.bf16.msra.mxu0 0
        %1357 = vmatprep.subr.bf16.mxu0 0
        %1358 = vmatpush2.bf16.msra.mxu0 0
        %1359 = vmatprep.subr.bf16.mxu0 0
        %1360 = vmatpush2.bf16.msra.mxu0 0
        %1361 = vmatprep.subr.bf16.mxu0 0
        %1362 = vmatpush2.bf16.msra.mxu0 0
        %1363 = vmatprep.subr.bf16.mxu0 0
        %1364 = vmatpush2.bf16.msra.mxu0 0
        %1365 = vmatprep.subr.bf16.mxu0 0
        %1366 = vmatpush2.bf16.msra.mxu0 0
        %1367 = vmatprep.subr.bf16.mxu0 0
        %1368 = vmatpush2.bf16.msra.mxu0 0
        %1369 = vmatprep.subr.bf16.mxu0 0
        %1370 = vmatpush2.bf16.msra.mxu0 0
        %1371 = vmatprep.mubr.bf16.mxu0 0
        %1372 = vmatmul.mubr.bf16.gmra.mxu0 %v1337
        %v1373 = vpop.f32.mrf.mxu0
        %v1374 = vadd.f32 0.0, %v1373
        %v1375 = vpop.f32.mrf.mxu0
        %v1376 = vpop.f32.mrf.mxu0
        %v1377 = vadd.f32 0.0, %v1376
        %v1378 = vpop.f32.mrf.mxu0
        %1379 = vdwg.mxu0
        %v1382 = vunpack.c.l.b16 %v752
        %v1383 = vunpack.c.l.b16 %v753
        %v1384 = vpack.c.b16 %v1383, %v1382
        %v1387 = vsel %vm919, %v1034, 0
        %1389 = vmatprep.subr.bf16.mxu0 0
        %1390 = vmatpush1.bf16.msra.mxu0 0
        %1391 = vmatprep.subr.bf16.mxu0 0
        %1392 = vmatpush1.bf16.msra.mxu0 0
        %1393 = vmatprep.subr.bf16.mxu0 0
        %1394 = vmatpush1.bf16.msra.mxu0 0
        %1395 = vmatprep.subr.bf16.mxu0 0
        %1396 = vmatpush1.bf16.msra.mxu0 0
        %1397 = vmatprep.subr.bf16.mxu0 0
        %1398 = vmatpush1.bf16.msra.mxu0 0
        %1399 = vmatprep.subr.bf16.mxu0 0
        %1400 = vmatpush1.bf16.msra.mxu0 0
        %1401 = vmatprep.subr.bf16.mxu0 0
        %1402 = vmatpush1.bf16.msra.mxu0 0
        %1403 = vmatprep.subr.bf16.mxu0 0
        %1404 = vmatpush1.bf16.msra.mxu0 %v1384
        %1405 = vmatprep.subr.bf16.mxu0 0
        %1406 = vmatpush2.bf16.msra.mxu0 0
        %1407 = vmatprep.subr.bf16.mxu0 0
        %1408 = vmatpush2.bf16.msra.mxu0 0
        %1409 = vmatprep.subr.bf16.mxu0 0
        %1410 = vmatpush2.bf16.msra.mxu0 0
        %1411 = vmatprep.subr.bf16.mxu0 0
        %1412 = vmatpush2.bf16.msra.mxu0 0
        %1413 = vmatprep.subr.bf16.mxu0 0
        %1414 = vmatpush2.bf16.msra.mxu0 0
        %1415 = vmatprep.subr.bf16.mxu0 0
        %1416 = vmatpush2.bf16.msra.mxu0 0
        %1417 = vmatprep.subr.bf16.mxu0 0
        %1418 = vmatpush2.bf16.msra.mxu0 0
        %1419 = vmatprep.subr.bf16.mxu0 0
        %1420 = vmatpush2.bf16.msra.mxu0 0
        %1421 = vmatprep.mubr.bf16.mxu0 0
        %1422 = vmatmul.mubr.bf16.gmra.mxu0 %v1387
        %v1423 = vpop.f32.mrf.mxu0
        %v1424 = vadd.f32 %v1374, %v1423
        %v1425 = vpop.f32.mrf.mxu0
        %v1426 = vpop.f32.mrf.mxu0
        %v1427 = vadd.f32 %v1377, %v1426
        %v1428 = vpop.f32.mrf.mxu0
        %1429 = vdwg.mxu0
        %s1430 = scalar_lea.vmem %s638, 32
        %v1431 = vld [vmem:[%s1430] sm:$0xf]
        %v1432 = vld [vmem:[%s1430 + $0x4] sm:$0xf]
        %v1433 = vld [vmem:[%s1430 + $0x8] sm:$0xf]
        %v1434 = vld [vmem:[%s1430 + $0xc] sm:$0xf]
        %s1435 = scalar_lea.vmem %s643, 32
        %v1436 = vld [vmem:[%s1435] sm:$0xf]
        %v1437 = vld [vmem:[%s1435 + $0x4] sm:$0xf]
        %v1438 = vld [vmem:[%s1435 + $0x8] sm:$0xf]
        %v1439 = vld [vmem:[%s1435 + $0xc] sm:$0xf]
        %s1440 = scalar_lea.vmem %s648, 32
        %v1441 = vld [vmem:[%s1440] sm:$0xf]
        %v1442 = vld [vmem:[%s1440 + $0x4] sm:$0xf]
        %v1443 = vld [vmem:[%s1440 + $0x8] sm:$0xf]
        %v1444 = vld [vmem:[%s1440 + $0xc] sm:$0xf]
        %s1445 = scalar_lea.vmem %s653, 16
        %v1446 = vld [vmem:[%s1445] sm:$0xf]
        %v1447 = vld [vmem:[%s1445 + $0x4] sm:$0xf]
        %v1452 = vunpack.c.l.b16 %v1431
        %v1453 = vunpack.c.l.b16 %v1432
        %v1454 = vunpack.c.l.b16 %v1433
        %v1455 = vunpack.c.l.b16 %v1434
        %v1456 = vpack.c.b16 %v1453, %v1452
        %v1457 = vpack.c.b16 %v1455, %v1454
        %1460 = vmatprep.subr.bf16.mxu0 0
        %1461 = vmatpush1.bf16.msra.mxu0 0
        %1462 = vmatprep.subr.bf16.mxu0 0
        %1463 = vmatpush1.bf16.msra.mxu0 0
        %1464 = vmatprep.subr.bf16.mxu0 0
        %1465 = vmatpush1.bf16.msra.mxu0 0
        %1466 = vmatprep.subr.bf16.mxu0 0
        %1467 = vmatpush1.bf16.msra.mxu0 0
        %1468 = vmatprep.subr.bf16.mxu0 0
        %1469 = vmatpush1.bf16.msra.mxu0 0
        %1470 = vmatprep.subr.bf16.mxu0 0
        %1471 = vmatpush1.bf16.msra.mxu0 0
        %1472 = vmatprep.subr.bf16.mxu0 0
        %1473 = vmatpush1.bf16.msra.mxu0 %v1457
        %1474 = vmatprep.subr.bf16.mxu0 0
        %1475 = vmatpush1.bf16.msra.mxu0 %v1456
        %1476 = vmatprep.subr.bf16.mxu0 0
        %1477 = vmatpush2.bf16.msra.mxu0 0
        %1478 = vmatprep.subr.bf16.mxu0 0
        %1479 = vmatpush2.bf16.msra.mxu0 0
        %1480 = vmatprep.subr.bf16.mxu0 0
        %1481 = vmatpush2.bf16.msra.mxu0 0
        %1482 = vmatprep.subr.bf16.mxu0 0
        %1483 = vmatpush2.bf16.msra.mxu0 0
        %1484 = vmatprep.subr.bf16.mxu0 0
        %1485 = vmatpush2.bf16.msra.mxu0 0
        %1486 = vmatprep.subr.bf16.mxu0 0
        %1487 = vmatpush2.bf16.msra.mxu0 0
        %1488 = vmatprep.subr.bf16.mxu0 0
        %1489 = vmatpush2.bf16.msra.mxu0 0
        %1490 = vmatprep.subr.bf16.mxu0 0
        %1491 = vmatpush2.bf16.msra.mxu0 0
        %1492 = vmatprep.mubr.bf16.mxu0 0
        %1493 = vmatmul.mubr.bf16.gmra.mxu0 %v767
        %v1494 = vpop.f32.mrf.mxu0
        %v1495 = vadd.f32 0.0, %v1494
        %v1496 = vpop.f32.mrf.mxu0
        %v1497 = vpop.f32.mrf.mxu0
        %v1498 = vadd.f32 0.0, %v1497
        %v1499 = vpop.f32.mrf.mxu0
        %1500 = vdwg.mxu0
        %v1501 = vpack.c.bf16 %v1498, %v1495
        %v1506 = vunpack.c.l.b16 %v1436
        %v1507 = vunpack.c.l.b16 %v1437
        %v1508 = vunpack.c.l.b16 %v1438
        %v1509 = vunpack.c.l.b16 %v1439
        %v1510 = vpack.c.b16 %v1507, %v1506
        %v1511 = vpack.c.b16 %v1509, %v1508
        %1514 = vmatprep.subr.bf16.mxu0 0
        %1515 = vmatpush1.bf16.msra.mxu0 0
        %1516 = vmatprep.subr.bf16.mxu0 0
        %1517 = vmatpush1.bf16.msra.mxu0 0
        %1518 = vmatprep.subr.bf16.mxu0 0
        %1519 = vmatpush1.bf16.msra.mxu0 0
        %1520 = vmatprep.subr.bf16.mxu0 0
        %1521 = vmatpush1.bf16.msra.mxu0 0
        %1522 = vmatprep.subr.bf16.mxu0 0
        %1523 = vmatpush1.bf16.msra.mxu0 0
        %1524 = vmatprep.subr.bf16.mxu0 0
        %1525 = vmatpush1.bf16.msra.mxu0 0
        %1526 = vmatprep.subr.bf16.mxu0 0
        %1527 = vmatpush1.bf16.msra.mxu0 %v1511
        %1528 = vmatprep.subr.bf16.mxu0 0
        %1529 = vmatpush1.bf16.msra.mxu0 %v1510
        %1530 = vmatprep.subr.bf16.mxu0 0
        %1531 = vmatpush2.bf16.msra.mxu0 0
        %1532 = vmatprep.subr.bf16.mxu0 0
        %1533 = vmatpush2.bf16.msra.mxu0 0
        %1534 = vmatprep.subr.bf16.mxu0 0
        %1535 = vmatpush2.bf16.msra.mxu0 0
        %1536 = vmatprep.subr.bf16.mxu0 0
        %1537 = vmatpush2.bf16.msra.mxu0 0
        %1538 = vmatprep.subr.bf16.mxu0 0
        %1539 = vmatpush2.bf16.msra.mxu0 0
        %1540 = vmatprep.subr.bf16.mxu0 0
        %1541 = vmatpush2.bf16.msra.mxu0 0
        %1542 = vmatprep.subr.bf16.mxu0 0
        %1543 = vmatpush2.bf16.msra.mxu0 0
        %1544 = vmatprep.subr.bf16.mxu0 0
        %1545 = vmatpush2.bf16.msra.mxu0 0
        %1546 = vmatprep.mubr.bf16.mxu0 0
        %1547 = vmatmul.mubr.bf16.gmra.mxu0 %v767
        %v1548 = vpop.f32.mrf.mxu0
        %v1549 = vadd.f32 0.0, %v1548
        %v1550 = vpop.f32.mrf.mxu0
        %v1551 = vpop.f32.mrf.mxu0
        %v1552 = vadd.f32 0.0, %v1551
        %v1553 = vpop.f32.mrf.mxu0
        %1554 = vdwg.mxu0
        %v1555 = vpack.c.bf16 %v1552, %v1549
        %v1560 = vunpack.c.l.b16 %v1441
        %v1561 = vunpack.c.l.b16 %v1442
        %v1562 = vunpack.c.l.b16 %v1443
        %v1563 = vunpack.c.l.b16 %v1444
        %v1564 = vpack.c.b16 %v1561, %v1560
        %v1565 = vpack.c.b16 %v1563, %v1562
        %1568 = vmatprep.subr.bf16.mxu0 0
        %1569 = vmatpush1.bf16.msra.mxu0 0
        %1570 = vmatprep.subr.bf16.mxu0 0
        %1571 = vmatpush1.bf16.msra.mxu0 0
        %1572 = vmatprep.subr.bf16.mxu0 0
        %1573 = vmatpush1.bf16.msra.mxu0 0
        %1574 = vmatprep.subr.bf16.mxu0 0
        %1575 = vmatpush1.bf16.msra.mxu0 0
        %1576 = vmatprep.subr.bf16.mxu0 0
        %1577 = vmatpush1.bf16.msra.mxu0 0
        %1578 = vmatprep.subr.bf16.mxu0 0
        %1579 = vmatpush1.bf16.msra.mxu0 0
        %1580 = vmatprep.subr.bf16.mxu0 0
        %1581 = vmatpush1.bf16.msra.mxu0 %v1565
        %1582 = vmatprep.subr.bf16.mxu0 0
        %1583 = vmatpush1.bf16.msra.mxu0 %v1564
        %1584 = vmatprep.subr.bf16.mxu0 0
        %1585 = vmatpush2.bf16.msra.mxu0 0
        %1586 = vmatprep.subr.bf16.mxu0 0
        %1587 = vmatpush2.bf16.msra.mxu0 0
        %1588 = vmatprep.subr.bf16.mxu0 0
        %1589 = vmatpush2.bf16.msra.mxu0 0
        %1590 = vmatprep.subr.bf16.mxu0 0
        %1591 = vmatpush2.bf16.msra.mxu0 0
        %1592 = vmatprep.subr.bf16.mxu0 0
        %1593 = vmatpush2.bf16.msra.mxu0 0
        %1594 = vmatprep.subr.bf16.mxu0 0
        %1595 = vmatpush2.bf16.msra.mxu0 0
        %1596 = vmatprep.subr.bf16.mxu0 0
        %1597 = vmatpush2.bf16.msra.mxu0 0
        %1598 = vmatprep.subr.bf16.mxu0 0
        %1599 = vmatpush2.bf16.msra.mxu0 0
        %1600 = vmatprep.mubr.bf16.mxu0 0
        %1601 = vmatmul.mubr.bf16.gmra.mxu0 %v767
        %v1602 = vpop.f32.mrf.mxu0
        %v1603 = vadd.f32 0.0, %v1602
        %v1604 = vpop.f32.mrf.mxu0
        %v1605 = vpop.f32.mrf.mxu0
        %v1606 = vadd.f32 0.0, %v1605
        %v1607 = vpop.f32.mrf.mxu0
        %1608 = vdwg.mxu0
        %v1609 = vpack.c.bf16 %v1606, %v1603
        %v1611 = vsel %vm919, %v1501, 0
        %v1614 = vsel %vm919, %v1555, 0
        %1616 = vmatprep.subr.bf16.mxu0 0
        %1617 = vmatpush1.bf16.xpose.msra.mxu0 0
        %1618 = vmatprep.subr.bf16.mxu0 0
        %1619 = vmatpush1.bf16.xpose.msra.mxu0 0
        %1620 = vmatprep.subr.bf16.mxu0 0
        %1621 = vmatpush1.bf16.xpose.msra.mxu0 0
        %1622 = vmatprep.subr.bf16.mxu0 0
        %1623 = vmatpush1.bf16.xpose.msra.mxu0 0
        %1624 = vmatprep.subr.bf16.mxu0 0
        %1625 = vmatpush1.bf16.xpose.msra.mxu0 0
        %1626 = vmatprep.subr.bf16.mxu0 0
        %1627 = vmatpush1.bf16.xpose.msra.mxu0 0
        %1628 = vmatprep.subr.bf16.mxu0 0
        %1629 = vmatpush1.bf16.xpose.msra.mxu0 0
        %1630 = vmatprep.subr.bf16.mxu0 0
        %1631 = vmatpush1.bf16.xpose.msra.mxu0 %v1614
        %1632 = vmatprep.subr.bf16.mxu0 0
        %1633 = vmatpush2.bf16.xpose.msra.mxu0 0
        %1634 = vmatprep.subr.bf16.mxu0 0
        %1635 = vmatpush2.bf16.xpose.msra.mxu0 0
        %1636 = vmatprep.subr.bf16.mxu0 0
        %1637 = vmatpush2.bf16.xpose.msra.mxu0 0
        %1638 = vmatprep.subr.bf16.mxu0 0
        %1639 = vmatpush2.bf16.xpose.msra.mxu0 0
        %1640 = vmatprep.subr.bf16.mxu0 0
        %1641 = vmatpush2.bf16.xpose.msra.mxu0 0
        %1642 = vmatprep.subr.bf16.mxu0 0
        %1643 = vmatpush2.bf16.xpose.msra.mxu0 0
        %1644 = vmatprep.subr.bf16.mxu0 0
        %1645 = vmatpush2.bf16.xpose.msra.mxu0 0
        %1646 = vmatprep.subr.bf16.mxu0 0
        %1647 = vmatpush2.bf16.xpose.msra.mxu0 0
        %1648 = vmatprep.mubr.bf16.mxu0 0
        %1649 = vmatmul.mubr.bf16.gmra.mxu0 %v1611
        %v1650 = vpop.f32.mrf.mxu0
        %v1651 = vadd.f32 %v691, %v1650
        %v1652 = vpop.f32.mrf.mxu0
        %v1653 = vpop.f32.mrf.mxu0
        %v1654 = vadd.f32 %v692, %v1653
        %v1655 = vpop.f32.mrf.mxu0
        %1656 = vdwg.mxu0
        %v1657 = vsel %vm919, %v1651, -inf
        %1658 = vmax.xlane.f32.xlu0 %v1657
        %v1659 = vpop.xlane.xlu0 %1658
        %v1660 = vsel %vm919, %v1654, -inf
        %1661 = vmax.xlane.f32.xlu0 %v1660
        %v1662 = vpop.xlane.xlu0 %1661
        %v1663 = vsub.f32 %v1651, %v1659
        %v1664 = vsub.f32 %v1654, %v1662
        %v1665 = vmul.f32 %v1663, 1.442695
        %v1666 = vpow.pop %v1665
        %v1667 = vmul.f32 %v1664, 1.442695
        %v1668 = vpow.pop %v1667
        %v1669 = vsel %vm919, %v1666, 0.0
        %1670 = vadd.xlane.f32.xlu0 %v1669
        %v1671 = vpop.xlane.xlu0 %1670
        %v1672 = vsel %vm919, %v1668, 0.0
        %1673 = vadd.xlane.f32.xlu0 %v1672
        %v1674 = vpop.xlane.xlu0 %1673
        %v1675 = vrcp.pop %v1671
        %v1676 = vrcp.pop %v1674
        %v1677 = vmul.f32 %v1666, %v1675
        %v1678 = vmul.f32 %v1668, %v1676
        %v1679 = vpack.c.bf16 %v1678, %v1677
        %v1681 = vsel %vm919, %v1679, 0
        %1683 = vmatprep.subr.bf16.mxu0 0
        %1684 = vmatpush1.bf16.msra.mxu0 0
        %1685 = vmatprep.subr.bf16.mxu0 0
        %1686 = vmatpush1.bf16.msra.mxu0 0
        %1687 = vmatprep.subr.bf16.mxu0 0
        %1688 = vmatpush1.bf16.msra.mxu0 0
        %1689 = vmatprep.subr.bf16.mxu0 0
        %1690 = vmatpush1.bf16.msra.mxu0 0
        %1691 = vmatprep.subr.bf16.mxu0 0
        %1692 = vmatpush1.bf16.msra.mxu0 0
        %1693 = vmatprep.subr.bf16.mxu0 0
        %1694 = vmatpush1.bf16.msra.mxu0 0
        %1695 = vmatprep.subr.bf16.mxu0 0
        %1696 = vmatpush1.bf16.msra.mxu0 0
        %1697 = vmatprep.subr.bf16.mxu0 0
        %1698 = vmatpush1.bf16.msra.mxu0 %v1609
        %1699 = vmatprep.subr.bf16.mxu0 0
        %1700 = vmatpush2.bf16.msra.mxu0 0
        %1701 = vmatprep.subr.bf16.mxu0 0
        %1702 = vmatpush2.bf16.msra.mxu0 0
        %1703 = vmatprep.subr.bf16.mxu0 0
        %1704 = vmatpush2.bf16.msra.mxu0 0
        %1705 = vmatprep.subr.bf16.mxu0 0
        %1706 = vmatpush2.bf16.msra.mxu0 0
        %1707 = vmatprep.subr.bf16.mxu0 0
        %1708 = vmatpush2.bf16.msra.mxu0 0
        %1709 = vmatprep.subr.bf16.mxu0 0
        %1710 = vmatpush2.bf16.msra.mxu0 0
        %1711 = vmatprep.subr.bf16.mxu0 0
        %1712 = vmatpush2.bf16.msra.mxu0 0
        %1713 = vmatprep.subr.bf16.mxu0 0
        %1714 = vmatpush2.bf16.msra.mxu0 0
        %1715 = vmatprep.mubr.bf16.mxu0 0
        %1716 = vmatmul.mubr.bf16.gmra.mxu0 %v1681
        %v1717 = vpop.f32.mrf.mxu0
        %v1718 = vadd.f32 0.0, %v1717
        %v1719 = vpop.f32.mrf.mxu0
        %v1720 = vpop.f32.mrf.mxu0
        %v1721 = vadd.f32 0.0, %v1720
        %v1722 = vpop.f32.mrf.mxu0
        %1723 = vdwg.mxu0
        %v1724 = vpack.c.bf16 %v1721, %v1718
        %v1727 = vunpack.c.l.b16 %v1446
        %v1728 = vunpack.c.l.b16 %v1447
        %v1729 = vpack.c.b16 %v1728, %v1727
        %v1732 = vsel %vm919, %v1724, 0
        %1734 = vmatprep.subr.bf16.mxu0 0
        %1735 = vmatpush1.bf16.msra.mxu0 0
        %1736 = vmatprep.subr.bf16.mxu0 0
        %1737 = vmatpush1.bf16.msra.mxu0 0
        %1738 = vmatprep.subr.bf16.mxu0 0
        %1739 = vmatpush1.bf16.msra.mxu0 0
        %1740 = vmatprep.subr.bf16.mxu0 0
        %1741 = vmatpush1.bf16.msra.mxu0 0
        %1742 = vmatprep.subr.bf16.mxu0 0
        %1743 = vmatpush1.bf16.msra.mxu0 0
        %1744 = vmatprep.subr.bf16.mxu0 0
        %1745 = vmatpush1.bf16.msra.mxu0 0
        %1746 = vmatprep.subr.bf16.mxu0 0
        %1747 = vmatpush1.bf16.msra.mxu0 0
        %1748 = vmatprep.subr.bf16.mxu0 0
        %1749 = vmatpush1.bf16.msra.mxu0 %v1729
        %1750 = vmatprep.subr.bf16.mxu0 0
        %1751 = vmatpush2.bf16.msra.mxu0 0
        %1752 = vmatprep.subr.bf16.mxu0 0
        %1753 = vmatpush2.bf16.msra.mxu0 0
        %1754 = vmatprep.subr.bf16.mxu0 0
        %1755 = vmatpush2.bf16.msra.mxu0 0
        %1756 = vmatprep.subr.bf16.mxu0 0
        %1757 = vmatpush2.bf16.msra.mxu0 0
        %1758 = vmatprep.subr.bf16.mxu0 0
        %1759 = vmatpush2.bf16.msra.mxu0 0
        %1760 = vmatprep.subr.bf16.mxu0 0
        %1761 = vmatpush2.bf16.msra.mxu0 0
        %1762 = vmatprep.subr.bf16.mxu0 0
        %1763 = vmatpush2.bf16.msra.mxu0 0
        %1764 = vmatprep.subr.bf16.mxu0 0
        %1765 = vmatpush2.bf16.msra.mxu0 0
        %1766 = vmatprep.mubr.bf16.mxu0 0
        %1767 = vmatmul.mubr.bf16.gmra.mxu0 %v1732
        %v1768 = vpop.f32.mrf.mxu0
        %v1769 = vadd.f32 0.0, %v1768
        %v1770 = vpop.f32.mrf.mxu0
        %v1771 = vpop.f32.mrf.mxu0
        %v1772 = vadd.f32 0.0, %v1771
        %v1773 = vpop.f32.mrf.mxu0
        %1774 = vdwg.mxu0
        %v1775 = vadd.f32 %v1424, %v1769
        %v1776 = vadd.f32 %v1427, %v1772
        %s1777 = scalar_lea.vmem %s638, 48
        %v1778 = vld [vmem:[%s1777] sm:$0xf]
        %v1779 = vld [vmem:[%s1777 + $0x4] sm:$0xf]
        %v1780 = vld [vmem:[%s1777 + $0x8] sm:$0xf]
        %v1781 = vld [vmem:[%s1777 + $0xc] sm:$0xf]
        %s1782 = scalar_lea.vmem %s643, 48
        %v1783 = vld [vmem:[%s1782] sm:$0xf]
        %v1784 = vld [vmem:[%s1782 + $0x4] sm:$0xf]
        %v1785 = vld [vmem:[%s1782 + $0x8] sm:$0xf]
        %v1786 = vld [vmem:[%s1782 + $0xc] sm:$0xf]
        %s1787 = scalar_lea.vmem %s648, 48
        %v1788 = vld [vmem:[%s1787] sm:$0xf]
        %v1789 = vld [vmem:[%s1787 + $0x4] sm:$0xf]
        %v1790 = vld [vmem:[%s1787 + $0x8] sm:$0xf]
        %v1791 = vld [vmem:[%s1787 + $0xc] sm:$0xf]
        %s1792 = scalar_lea.vmem %s653, 24
        %v1793 = vld [vmem:[%s1792] sm:$0xf]
        %v1794 = vld [vmem:[%s1792 + $0x4] sm:$0xf]
        %v1799 = vunpack.c.l.b16 %v1778
        %v1800 = vunpack.c.l.b16 %v1779
        %v1801 = vunpack.c.l.b16 %v1780
        %v1802 = vunpack.c.l.b16 %v1781
        %v1803 = vpack.c.b16 %v1800, %v1799
        %v1804 = vpack.c.b16 %v1802, %v1801
        %1807 = vmatprep.subr.bf16.mxu0 0
        %1808 = vmatpush1.bf16.msra.mxu0 0
        %1809 = vmatprep.subr.bf16.mxu0 0
        %1810 = vmatpush1.bf16.msra.mxu0 0
        %1811 = vmatprep.subr.bf16.mxu0 0
        %1812 = vmatpush1.bf16.msra.mxu0 0
        %1813 = vmatprep.subr.bf16.mxu0 0
        %1814 = vmatpush1.bf16.msra.mxu0 0
        %1815 = vmatprep.subr.bf16.mxu0 0
        %1816 = vmatpush1.bf16.msra.mxu0 0
        %1817 = vmatprep.subr.bf16.mxu0 0
        %1818 = vmatpush1.bf16.msra.mxu0 0
        %1819 = vmatprep.subr.bf16.mxu0 0
        %1820 = vmatpush1.bf16.msra.mxu0 %v1804
        %1821 = vmatprep.subr.bf16.mxu0 0
        %1822 = vmatpush1.bf16.msra.mxu0 %v1803
        %1823 = vmatprep.subr.bf16.mxu0 0
        %1824 = vmatpush2.bf16.msra.mxu0 0
        %1825 = vmatprep.subr.bf16.mxu0 0
        %1826 = vmatpush2.bf16.msra.mxu0 0
        %1827 = vmatprep.subr.bf16.mxu0 0
        %1828 = vmatpush2.bf16.msra.mxu0 0
        %1829 = vmatprep.subr.bf16.mxu0 0
        %1830 = vmatpush2.bf16.msra.mxu0 0
        %1831 = vmatprep.subr.bf16.mxu0 0
        %1832 = vmatpush2.bf16.msra.mxu0 0
        %1833 = vmatprep.subr.bf16.mxu0 0
        %1834 = vmatpush2.bf16.msra.mxu0 0
        %1835 = vmatprep.subr.bf16.mxu0 0
        %1836 = vmatpush2.bf16.msra.mxu0 0
        %1837 = vmatprep.subr.bf16.mxu0 0
        %1838 = vmatpush2.bf16.msra.mxu0 0
        %1839 = vmatprep.mubr.bf16.mxu0 0
        %1840 = vmatmul.mubr.bf16.gmra.mxu0 %v767
        %v1841 = vpop.f32.mrf.mxu0
        %v1842 = vadd.f32 0.0, %v1841
        %v1843 = vpop.f32.mrf.mxu0
        %v1844 = vpop.f32.mrf.mxu0
        %v1845 = vadd.f32 0.0, %v1844
        %v1846 = vpop.f32.mrf.mxu0
        %1847 = vdwg.mxu0
        %v1848 = vpack.c.bf16 %v1845, %v1842
        %v1853 = vunpack.c.l.b16 %v1783
        %v1854 = vunpack.c.l.b16 %v1784
        %v1855 = vunpack.c.l.b16 %v1785
        %v1856 = vunpack.c.l.b16 %v1786
        %v1857 = vpack.c.b16 %v1854, %v1853
        %v1858 = vpack.c.b16 %v1856, %v1855
        %1861 = vmatprep.subr.bf16.mxu0 0
        %1862 = vmatpush1.bf16.msra.mxu0 0
        %1863 = vmatprep.subr.bf16.mxu0 0
        %1864 = vmatpush1.bf16.msra.mxu0 0
        %1865 = vmatprep.subr.bf16.mxu0 0
        %1866 = vmatpush1.bf16.msra.mxu0 0
        %1867 = vmatprep.subr.bf16.mxu0 0
        %1868 = vmatpush1.bf16.msra.mxu0 0
        %1869 = vmatprep.subr.bf16.mxu0 0
        %1870 = vmatpush1.bf16.msra.mxu0 0
        %1871 = vmatprep.subr.bf16.mxu0 0
        %1872 = vmatpush1.bf16.msra.mxu0 0
        %1873 = vmatprep.subr.bf16.mxu0 0
        %1874 = vmatpush1.bf16.msra.mxu0 %v1858
        %1875 = vmatprep.subr.bf16.mxu0 0
        %1876 = vmatpush1.bf16.msra.mxu0 %v1857
        %1877 = vmatprep.subr.bf16.mxu0 0
        %1878 = vmatpush2.bf16.msra.mxu0 0
        %1879 = vmatprep.subr.bf16.mxu0 0
        %1880 = vmatpush2.bf16.msra.mxu0 0
        %1881 = vmatprep.subr.bf16.mxu0 0
        %1882 = vmatpush2.bf16.msra.mxu0 0
        %1883 = vmatprep.subr.bf16.mxu0 0
        %1884 = vmatpush2.bf16.msra.mxu0 0
        %1885 = vmatprep.subr.bf16.mxu0 0
        %1886 = vmatpush2.bf16.msra.mxu0 0
        %1887 = vmatprep.subr.bf16.mxu0 0
        %1888 = vmatpush2.bf16.msra.mxu0 0
        %1889 = vmatprep.subr.bf16.mxu0 0
        %1890 = vmatpush2.bf16.msra.mxu0 0
        %1891 = vmatprep.subr.bf16.mxu0 0
        %1892 = vmatpush2.bf16.msra.mxu0 0
        %1893 = vmatprep.mubr.bf16.mxu0 0
        %1894 = vmatmul.mubr.bf16.gmra.mxu0 %v767
        %v1895 = vpop.f32.mrf.mxu0
        %v1896 = vadd.f32 0.0, %v1895
        %v1897 = vpop.f32.mrf.mxu0
        %v1898 = vpop.f32.mrf.mxu0
        %v1899 = vadd.f32 0.0, %v1898
        %v1900 = vpop.f32.mrf.mxu0
        %1901 = vdwg.mxu0
        %v1902 = vpack.c.bf16 %v1899, %v1896
        %v1907 = vunpack.c.l.b16 %v1788
        %v1908 = vunpack.c.l.b16 %v1789
        %v1909 = vunpack.c.l.b16 %v1790
        %v1910 = vunpack.c.l.b16 %v1791
        %v1911 = vpack.c.b16 %v1908, %v1907
        %v1912 = vpack.c.b16 %v1910, %v1909
        %1915 = vmatprep.subr.bf16.mxu0 0
        %1916 = vmatpush1.bf16.msra.mxu0 0
        %1917 = vmatprep.subr.bf16.mxu0 0
        %1918 = vmatpush1.bf16.msra.mxu0 0
        %1919 = vmatprep.subr.bf16.mxu0 0
        %1920 = vmatpush1.bf16.msra.mxu0 0
        %1921 = vmatprep.subr.bf16.mxu0 0
        %1922 = vmatpush1.bf16.msra.mxu0 0
        %1923 = vmatprep.subr.bf16.mxu0 0
        %1924 = vmatpush1.bf16.msra.mxu0 0
        %1925 = vmatprep.subr.bf16.mxu0 0
        %1926 = vmatpush1.bf16.msra.mxu0 0
        %1927 = vmatprep.subr.bf16.mxu0 0
        %1928 = vmatpush1.bf16.msra.mxu0 %v1912
        %1929 = vmatprep.subr.bf16.mxu0 0
        %1930 = vmatpush1.bf16.msra.mxu0 %v1911
        %1931 = vmatprep.subr.bf16.mxu0 0
        %1932 = vmatpush2.bf16.msra.mxu0 0
        %1933 = vmatprep.subr.bf16.mxu0 0
        %1934 = vmatpush2.bf16.msra.mxu0 0
        %1935 = vmatprep.subr.bf16.mxu0 0
        %1936 = vmatpush2.bf16.msra.mxu0 0
        %1937 = vmatprep.subr.bf16.mxu0 0
        %1938 = vmatpush2.bf16.msra.mxu0 0
        %1939 = vmatprep.subr.bf16.mxu0 0
        %1940 = vmatpush2.bf16.msra.mxu0 0
        %1941 = vmatprep.subr.bf16.mxu0 0
        %1942 = vmatpush2.bf16.msra.mxu0 0
        %1943 = vmatprep.subr.bf16.mxu0 0
        %1944 = vmatpush2.bf16.msra.mxu0 0
        %1945 = vmatprep.subr.bf16.mxu0 0
        %1946 = vmatpush2.bf16.msra.mxu0 0
        %1947 = vmatprep.mubr.bf16.mxu0 0
        %1948 = vmatmul.mubr.bf16.gmra.mxu0 %v767
        %v1949 = vpop.f32.mrf.mxu0
        %v1950 = vadd.f32 0.0, %v1949
        %v1951 = vpop.f32.mrf.mxu0
        %v1952 = vpop.f32.mrf.mxu0
        %v1953 = vadd.f32 0.0, %v1952
        %v1954 = vpop.f32.mrf.mxu0
        %1955 = vdwg.mxu0
        %v1956 = vpack.c.bf16 %v1953, %v1950
        %v1958 = vsel %vm919, %v1848, 0
        %v1961 = vsel %vm919, %v1902, 0
        %1963 = vmatprep.subr.bf16.mxu0 0
        %1964 = vmatpush1.bf16.xpose.msra.mxu0 0
        %1965 = vmatprep.subr.bf16.mxu0 0
        %1966 = vmatpush1.bf16.xpose.msra.mxu0 0
        %1967 = vmatprep.subr.bf16.mxu0 0
        %1968 = vmatpush1.bf16.xpose.msra.mxu0 0
        %1969 = vmatprep.subr.bf16.mxu0 0
        %1970 = vmatpush1.bf16.xpose.msra.mxu0 0
        %1971 = vmatprep.subr.bf16.mxu0 0
        %1972 = vmatpush1.bf16.xpose.msra.mxu0 0
        %1973 = vmatprep.subr.bf16.mxu0 0
        %1974 = vmatpush1.bf16.xpose.msra.mxu0 0
        %1975 = vmatprep.subr.bf16.mxu0 0
        %1976 = vmatpush1.bf16.xpose.msra.mxu0 0
        %1977 = vmatprep.subr.bf16.mxu0 0
        %1978 = vmatpush1.bf16.xpose.msra.mxu0 %v1961
        %1979 = vmatprep.subr.bf16.mxu0 0
        %1980 = vmatpush2.bf16.xpose.msra.mxu0 0
        %1981 = vmatprep.subr.bf16.mxu0 0
        %1982 = vmatpush2.bf16.xpose.msra.mxu0 0
        %1983 = vmatprep.subr.bf16.mxu0 0
        %1984 = vmatpush2.bf16.xpose.msra.mxu0 0
        %1985 = vmatprep.subr.bf16.mxu0 0
        %1986 = vmatpush2.bf16.xpose.msra.mxu0 0
        %1987 = vmatprep.subr.bf16.mxu0 0
        %1988 = vmatpush2.bf16.xpose.msra.mxu0 0
        %1989 = vmatprep.subr.bf16.mxu0 0
        %1990 = vmatpush2.bf16.xpose.msra.mxu0 0
        %1991 = vmatprep.subr.bf16.mxu0 0
        %1992 = vmatpush2.bf16.xpose.msra.mxu0 0
        %1993 = vmatprep.subr.bf16.mxu0 0
        %1994 = vmatpush2.bf16.xpose.msra.mxu0 0
        %1995 = vmatprep.mubr.bf16.mxu0 0
        %1996 = vmatmul.mubr.bf16.gmra.mxu0 %v1958
        %v1997 = vpop.f32.mrf.mxu0
        %v1998 = vadd.f32 %v691, %v1997
        %v1999 = vpop.f32.mrf.mxu0
        %v2000 = vpop.f32.mrf.mxu0
        %v2001 = vadd.f32 %v692, %v2000
        %v2002 = vpop.f32.mrf.mxu0
        %2003 = vdwg.mxu0
        %v2004 = vsel %vm919, %v1998, -inf
        %2005 = vmax.xlane.f32.xlu0 %v2004
        %v2006 = vpop.xlane.xlu0 %2005
        %v2007 = vsel %vm919, %v2001, -inf
        %2008 = vmax.xlane.f32.xlu0 %v2007
        %v2009 = vpop.xlane.xlu0 %2008
        %v2010 = vsub.f32 %v1998, %v2006
        %v2011 = vsub.f32 %v2001, %v2009
        %v2012 = vmul.f32 %v2010, 1.442695
        %v2013 = vpow.pop %v2012
        %v2014 = vmul.f32 %v2011, 1.442695
        %v2015 = vpow.pop %v2014
        %v2016 = vsel %vm919, %v2013, 0.0
        %2017 = vadd.xlane.f32.xlu0 %v2016
        %v2018 = vpop.xlane.xlu0 %2017
        %v2019 = vsel %vm919, %v2015, 0.0
        %2020 = vadd.xlane.f32.xlu0 %v2019
        %v2021 = vpop.xlane.xlu0 %2020
        %v2022 = vrcp.pop %v2018
        %v2023 = vrcp.pop %v2021
        %v2024 = vmul.f32 %v2013, %v2022
        %v2025 = vmul.f32 %v2015, %v2023
        %v2026 = vpack.c.bf16 %v2025, %v2024
        %v2028 = vsel %vm919, %v2026, 0
        %2030 = vmatprep.subr.bf16.mxu0 0
        %2031 = vmatpush1.bf16.msra.mxu0 0
        %2032 = vmatprep.subr.bf16.mxu0 0
        %2033 = vmatpush1.bf16.msra.mxu0 0
        %2034 = vmatprep.subr.bf16.mxu0 0
        %2035 = vmatpush1.bf16.msra.mxu0 0
        %2036 = vmatprep.subr.bf16.mxu0 0
        %2037 = vmatpush1.bf16.msra.mxu0 0
        %2038 = vmatprep.subr.bf16.mxu0 0
        %2039 = vmatpush1.bf16.msra.mxu0 0
        %2040 = vmatprep.subr.bf16.mxu0 0
        %2041 = vmatpush1.bf16.msra.mxu0 0
        %2042 = vmatprep.subr.bf16.mxu0 0
        %2043 = vmatpush1.bf16.msra.mxu0 0
        %2044 = vmatprep.subr.bf16.mxu0 0
        %2045 = vmatpush1.bf16.msra.mxu0 %v1956
        %2046 = vmatprep.subr.bf16.mxu0 0
        %2047 = vmatpush2.bf16.msra.mxu0 0
        %2048 = vmatprep.subr.bf16.mxu0 0
        %2049 = vmatpush2.bf16.msra.mxu0 0
        %2050 = vmatprep.subr.bf16.mxu0 0
        %2051 = vmatpush2.bf16.msra.mxu0 0
        %2052 = vmatprep.subr.bf16.mxu0 0
        %2053 = vmatpush2.bf16.msra.mxu0 0
        %2054 = vmatprep.subr.bf16.mxu0 0
        %2055 = vmatpush2.bf16.msra.mxu0 0
        %2056 = vmatprep.subr.bf16.mxu0 0
        %2057 = vmatpush2.bf16.msra.mxu0 0
        %2058 = vmatprep.subr.bf16.mxu0 0
        %2059 = vmatpush2.bf16.msra.mxu0 0
        %2060 = vmatprep.subr.bf16.mxu0 0
        %2061 = vmatpush2.bf16.msra.mxu0 0
        %2062 = vmatprep.mubr.bf16.mxu0 0
        %2063 = vmatmul.mubr.bf16.gmra.mxu0 %v2028
        %v2064 = vpop.f32.mrf.mxu0
        %v2065 = vadd.f32 0.0, %v2064
        %v2066 = vpop.f32.mrf.mxu0
        %v2067 = vpop.f32.mrf.mxu0
        %v2068 = vadd.f32 0.0, %v2067
        %v2069 = vpop.f32.mrf.mxu0
        %2070 = vdwg.mxu0
        %v2071 = vpack.c.bf16 %v2068, %v2065
        %v2074 = vunpack.c.l.b16 %v1793
        %v2075 = vunpack.c.l.b16 %v1794
        %v2076 = vpack.c.b16 %v2075, %v2074
        %v2079 = vsel %vm919, %v2071, 0
        %2081 = vmatprep.subr.bf16.mxu0 0
        %2082 = vmatpush1.bf16.msra.mxu0 0
        %2083 = vmatprep.subr.bf16.mxu0 0
        %2084 = vmatpush1.bf16.msra.mxu0 0
        %2085 = vmatprep.subr.bf16.mxu0 0
        %2086 = vmatpush1.bf16.msra.mxu0 0
        %2087 = vmatprep.subr.bf16.mxu0 0
        %2088 = vmatpush1.bf16.msra.mxu0 0
        %2089 = vmatprep.subr.bf16.mxu0 0
        %2090 = vmatpush1.bf16.msra.mxu0 0
        %2091 = vmatprep.subr.bf16.mxu0 0
        %2092 = vmatpush1.bf16.msra.mxu0 0
        %2093 = vmatprep.subr.bf16.mxu0 0
        %2094 = vmatpush1.bf16.msra.mxu0 0
        %2095 = vmatprep.subr.bf16.mxu0 0
        %2096 = vmatpush1.bf16.msra.mxu0 %v2076
        %2097 = vmatprep.subr.bf16.mxu0 0
        %2098 = vmatpush2.bf16.msra.mxu0 0
        %2099 = vmatprep.subr.bf16.mxu0 0
        %2100 = vmatpush2.bf16.msra.mxu0 0
        %2101 = vmatprep.subr.bf16.mxu0 0
        %2102 = vmatpush2.bf16.msra.mxu0 0
        %2103 = vmatprep.subr.bf16.mxu0 0
        %2104 = vmatpush2.bf16.msra.mxu0 0
        %2105 = vmatprep.subr.bf16.mxu0 0
        %2106 = vmatpush2.bf16.msra.mxu0 0
        %2107 = vmatprep.subr.bf16.mxu0 0
        %2108 = vmatpush2.bf16.msra.mxu0 0
        %2109 = vmatprep.subr.bf16.mxu0 0
        %2110 = vmatpush2.bf16.msra.mxu0 0
        %2111 = vmatprep.subr.bf16.mxu0 0
        %2112 = vmatpush2.bf16.msra.mxu0 0
        %2113 = vmatprep.mubr.bf16.mxu0 0
        %2114 = vmatmul.mubr.bf16.gmra.mxu0 %v2079
        %v2115 = vpop.f32.mrf.mxu0
        %v2116 = vadd.f32 0.0, %v2115
        %v2117 = vpop.f32.mrf.mxu0
        %v2118 = vpop.f32.mrf.mxu0
        %v2119 = vadd.f32 0.0, %v2118
        %v2120 = vpop.f32.mrf.mxu0
        %2121 = vdwg.mxu0
        %v2122 = vadd.f32 %v1775, %v2116
        %v2123 = vadd.f32 %v1776, %v2119
        %v2124 = vld [vmem:[%s656] sm:$0x1]
        %v2126 = vlaneseq
        %v2127 = vshrl.u32 %v2126, 7
        %v2128 = vsub.s32 0, %v2127
        %v2129 = vrot.slane %v2124, %v2128
        %v2131 = vadd.f32 %v2122, %v2129
        %v2132 = vadd.f32 %v2123, %v2129
        %v2133 = vadd.f32 %v2131, %v689
        %v2134 = vadd.f32 %v2132, %v690
        %v2135 = vld [vmem:[%s659] sm:$0x1]
        %v2136 = vld [vmem:[%s662] sm:$0x1]
        %v2137 = vsel %vm695, %v2133, 0.0
        %2138 = vadd.xlane.f32.xlu0 %v2137
        %v2139 = vpop.xlane.xlu0 %2138
        %v2140 = vsel %vm695, %v2134, 0.0
        %2141 = vadd.xlane.f32.xlu0 %v2140
        %v2142 = vpop.xlane.xlu0 %2141
        %v2143 = vmul.f32 %v2139, %v702
        %v2144 = vmul.f32 %v2142, %v702
        %v2145 = vsub.f32 %v2133, %v2143
        %v2146 = vsub.f32 %v2134, %v2144
        %v2147 = vmul.f32 %v2145, %v2145
        %v2148 = vmul.f32 %v2146, %v2146
        %v2149 = vsel %vm695, %v2147, 0.0
        %2150 = vadd.xlane.f32.xlu0 %v2149
        %v2151 = vpop.xlane.xlu0 %2150
        %v2152 = vsel %vm695, %v2148, 0.0
        %2153 = vadd.xlane.f32.xlu0 %v2152
        %v2154 = vpop.xlane.xlu0 %2153
        %v2155 = vmul.f32 %v2151, %v702
        %v2156 = vmul.f32 %v2154, %v702
        %v2157 = vadd.f32 %v2155, 1e-05
        %v2158 = vadd.f32 %v2156, 1e-05
        %v2159 = vrsqrt.pop %v2157
        %v2160 = vrsqrt.pop %v2158
        %v2161 = vmul.f32 %v2145, %v2159
        %v2162 = vmul.f32 %v2146, %v2160
        %v2164 = vlaneseq
        %v2165 = vshrl.u32 %v2164, 7
        %v2166 = vsub.s32 0, %v2165
        %v2167 = vrot.slane %v2135, %v2166
        %v2169 = vmul.f32 %v2161, %v2167
        %v2170 = vmul.f32 %v2162, %v2167
        %v2172 = vlaneseq
        %v2173 = vshrl.u32 %v2172, 7
        %v2174 = vsub.s32 0, %v2173
        %v2175 = vrot.slane %v2136, %v2174
        %v2177 = vadd.f32 %v2169, %v2175
        %v2178 = vadd.f32 %v2170, %v2175
        %v2179 = vpack.c.bf16 %v2178, %v2177
        %v2180 = vld [vmem:[%s667] sm:$0xf]
        %v2181 = vld [vmem:[%s667 + $0x4] sm:$0xf]
        %v2182 = vld [vmem:[%s667 + $0x8] sm:$0xf]
        %v2183 = vld [vmem:[%s667 + $0xc] sm:$0xf]
        %v2184 = vld [vmem:[%s670] sm:$0x1]
        %v2186 = vlaneseq
        %v2187 = vshrl.u32 %v2186, 7
        %v2188 = vsub.s32 0, %v2187
        %v2189 = vrot.slane %v2184, %v2188
        %v2195 = vunpack.c.l.b16 %v2180
        %v2196 = vunpack.c.l.b16 %v2181
        %v2197 = vunpack.c.l.b16 %v2182
        %v2198 = vunpack.c.l.b16 %v2183
        %v2199 = vpack.c.b16 %v2196, %v2195
        %v2200 = vpack.c.b16 %v2198, %v2197
        %v2204 = vsel %vm695, %v2179, 0
        %2206 = vmatprep.subr.bf16.mxu0 0
        %2207 = vmatpush1.bf16.msra.mxu0 0
        %2208 = vmatprep.subr.bf16.mxu0 0
        %2209 = vmatpush1.bf16.msra.mxu0 0
        %2210 = vmatprep.subr.bf16.mxu0 0
        %2211 = vmatpush1.bf16.msra.mxu0 0
        %2212 = vmatprep.subr.bf16.mxu0 0
        %2213 = vmatpush1.bf16.msra.mxu0 0
        %2214 = vmatprep.subr.bf16.mxu0 0
        %2215 = vmatpush1.bf16.msra.mxu0 0
        %2216 = vmatprep.subr.bf16.mxu0 0
        %2217 = vmatpush1.bf16.msra.mxu0 0
        %2218 = vmatprep.subr.bf16.mxu0 0
        %2219 = vmatpush1.bf16.msra.mxu0 %v2200
        %2220 = vmatprep.subr.bf16.mxu0 0
        %2221 = vmatpush1.bf16.msra.mxu0 %v2199
        %2222 = vmatprep.subr.bf16.mxu0 0
        %2223 = vmatpush2.bf16.msra.mxu0 0
        %2224 = vmatprep.subr.bf16.mxu0 0
        %2225 = vmatpush2.bf16.msra.mxu0 0
        %2226 = vmatprep.subr.bf16.mxu0 0
        %2227 = vmatpush2.bf16.msra.mxu0 0
        %2228 = vmatprep.subr.bf16.mxu0 0
        %2229 = vmatpush2.bf16.msra.mxu0 0
        %2230 = vmatprep.subr.bf16.mxu0 0
        %2231 = vmatpush2.bf16.msra.mxu0 0
        %2232 = vmatprep.subr.bf16.mxu0 0
        %2233 = vmatpush2.bf16.msra.mxu0 0
        %2234 = vmatprep.subr.bf16.mxu0 0
        %2235 = vmatpush2.bf16.msra.mxu0 0
        %2236 = vmatprep.subr.bf16.mxu0 0
        %2237 = vmatpush2.bf16.msra.mxu0 0
        %2238 = vmatprep.mubr.bf16.mxu0 0
        %2239 = vmatmul.mubr.bf16.gmra.mxu0 %v2204
        %v2240 = vpop.f32.mrf.mxu0
        %v2241 = vadd.f32 %v2189, %v2240
        %v2242 = vpop.f32.mrf.mxu0
        %v2243 = vpop.f32.mrf.mxu0
        %v2244 = vadd.f32 %v2189, %v2243
        %v2245 = vpop.f32.mrf.mxu0
        %2246 = vdwg.mxu0
        %v2247 = vmul.f32 %v2241, 0.5
        %v2248 = vmul.f32 %v2244, 0.5
        %v2249 = vmul.f32 %v2241, 0.70710677
        %v2250 = vmul.f32 %v2244, 0.70710677
        %v2251 = verf.f32.pop %v2249
        %v2252 = verf.f32.pop %v2250
        %v2253 = vadd.f32 %v2251, 1.0
        %v2254 = vadd.f32 %v2252, 1.0
        %v2255 = vmul.f32 %v2247, %v2253
        %v2256 = vmul.f32 %v2248, %v2254
        %v2257 = vpack.c.bf16 %v2256, %v2255
        %v2258 = vld [vmem:[%s675] sm:$0xf]
        %v2259 = vld [vmem:[%s675 + $0x4] sm:$0xf]
        %v2260 = vld [vmem:[%s675 + $0x8] sm:$0xf]
        %v2261 = vld [vmem:[%s675 + $0xc] sm:$0xf]
        %v2262 = vld [vmem:[%s675 + $0x10] sm:$0xf]
        %v2263 = vld [vmem:[%s675 + $0x14] sm:$0xf]
        %v2264 = vld [vmem:[%s675 + $0x18] sm:$0xf]
        %v2265 = vld [vmem:[%s675 + $0x1c] sm:$0xf]
        %v2266 = vld [vmem:[%s678] sm:$0x1]
        %v2268 = vlaneseq
        %v2269 = vshrl.u32 %v2268, 7
        %v2270 = vsub.s32 0, %v2269
        %v2271 = vrot.slane %v2266, %v2270
        %v2281 = vunpack.c.l.b16 %v2258
        %v2282 = vunpack.c.l.b16 %v2259
        %v2283 = vunpack.c.l.b16 %v2260
        %v2284 = vunpack.c.l.b16 %v2261
        %v2285 = vunpack.c.l.b16 %v2262
        %v2286 = vunpack.c.l.b16 %v2263
        %v2287 = vunpack.c.l.b16 %v2264
        %v2288 = vunpack.c.l.b16 %v2265
        %v2289 = vpack.c.b16 %v2282, %v2281
        %v2290 = vpack.c.b16 %v2284, %v2283
        %v2291 = vpack.c.b16 %v2286, %v2285
        %v2292 = vpack.c.b16 %v2288, %v2287
        %vm2297 = vcmask 523264
        %v2299 = vsel %vm2297, %v2257, 0
        %2301 = vmatprep.subr.bf16.mxu0 0
        %2302 = vmatpush1.bf16.msra.mxu0 0
        %2303 = vmatprep.subr.bf16.mxu0 0
        %2304 = vmatpush1.bf16.msra.mxu0 0
        %2305 = vmatprep.subr.bf16.mxu0 0
        %2306 = vmatpush1.bf16.msra.mxu0 0
        %2307 = vmatprep.subr.bf16.mxu0 0
        %2308 = vmatpush1.bf16.msra.mxu0 0
        %2309 = vmatprep.subr.bf16.mxu0 0
        %2310 = vmatpush1.bf16.msra.mxu0 %v2292
        %2311 = vmatprep.subr.bf16.mxu0 0
        %2312 = vmatpush1.bf16.msra.mxu0 %v2291
        %2313 = vmatprep.subr.bf16.mxu0 0
        %2314 = vmatpush1.bf16.msra.mxu0 %v2290
        %2315 = vmatprep.subr.bf16.mxu0 0
        %2316 = vmatpush1.bf16.msra.mxu0 %v2289
        %2317 = vmatprep.subr.bf16.mxu0 0
        %2318 = vmatpush2.bf16.msra.mxu0 0
        %2319 = vmatprep.subr.bf16.mxu0 0
        %2320 = vmatpush2.bf16.msra.mxu0 0
        %2321 = vmatprep.subr.bf16.mxu0 0
        %2322 = vmatpush2.bf16.msra.mxu0 0
        %2323 = vmatprep.subr.bf16.mxu0 0
        %2324 = vmatpush2.bf16.msra.mxu0 0
        %2325 = vmatprep.subr.bf16.mxu0 0
        %2326 = vmatpush2.bf16.msra.mxu0 0
        %2327 = vmatprep.subr.bf16.mxu0 0
        %2328 = vmatpush2.bf16.msra.mxu0 0
        %2329 = vmatprep.subr.bf16.mxu0 0
        %2330 = vmatpush2.bf16.msra.mxu0 0
        %2331 = vmatprep.subr.bf16.mxu0 0
        %2332 = vmatpush2.bf16.msra.mxu0 0
        %2333 = vmatprep.mubr.bf16.mxu0 0
        %2334 = vmatmul.mubr.bf16.gmra.mxu0 %v2299
        %v2335 = vpop.f32.mrf.mxu0
        %v2336 = vadd.f32 %v2271, %v2335
        %v2337 = vpop.f32.mrf.mxu0
        %v2338 = vpop.f32.mrf.mxu0
        %v2339 = vadd.f32 %v2271, %v2338
        %v2340 = vpop.f32.mrf.mxu0
        %2341 = vdwg.mxu0
        %v2342 = vadd.f32 %v2336, %v2133
        %v2343 = vadd.f32 %v2339, %v2134
        %2344 = vst.msk [vmem:[#allocation2] sm:$0xff] %vm695, %v2342
        %2345 = vst.msk [vmem:[#allocation2 + $0x8] sm:$0xff] %vm695, %v2343
        %p2346 = scmp.eq.s32.totalorder %s27, 1
        // Predicated region
        $region85: #{transformer_forward.1} parent=79 // pred_check
          %p2347 = pneg %p2346
        $region86: #{transformer_forward.1} parent=79 // pred_check_branch
          %2349 = sbr.rel (%p2347) target = $region88
        $region87: #{transformer_forward.1} parent=79 // pred_region
          %2350 = vst.msk [vmem:[#allocation3] sm:$0xff] %vm695, %v2342
          %2351 = vst.msk [vmem:[#allocation3 + $0x8] sm:$0xff] %vm695, %v2343
        $region88: #{transformer_forward.1} parent=79 // pred_fallthru
          _
        // Predicated region
        $region89: #{transformer_forward.1} parent=79 // pred_check
          %p2352 = pneg %p420
        $region90: #{transformer_forward.1} parent=79 // pred_check_branch
          %2354 = sbr.rel (%p2352) target = $region92
        $region91: #{transformer_forward.1} parent=79 // pred_region
          %s2356 = ssub.s32 256, 256
          %2357 = vsyncadd [#allocation4], %s2356
          %s2358 = sshll.u32 [#allocation3], 4
          %s2359 = int_to_ptr.vmem [resolvable:$true] %s2358
          %2364 = dma.vmem_to_hbm [thread:$0]  %s2359, 256, %s15, [#allocation4], 128, 128, 8
        $region92: #{transformer_forward.1} parent=79 // pred_fallthru
          _
        // Predicated region
        $region93: #{transformer_forward.1} parent=79 // pred_check
          %p2365 = pneg %p420
        $region94: #{transformer_forward.1} parent=79 // pred_check_branch
          %2367 = sbr.rel (%p2365) target = $region96
        $region95: #{transformer_forward.1} parent=79 // pred_region
          %2368 = dma.done [#allocation4], 256
        $region96: #{transformer_forward.1} parent=79 // pred_fallthru
          _
      $region80: #{transformer_forward.1} parent=5 // pred_fallthru
        _
      %p2369 = scmp.le.s32.totalorder 2, %s22
      // Predicated region
      $region97: #{transformer_forward.1} parent=5 // pred_check
        %p2370 = pneg %p2369
      $region98: #{transformer_forward.1} parent=5 // pred_check_branch
        %2372 = sbr.rel (%p2370) target = $region100
      $region99: #{transformer_forward.1} parent=5 // pred_region
        %s2373 = ssub.s32 %s22, 2
      $region100: #{transformer_forward.1} parent=5 // pred_fallthru
        _
    $region6: #{transformer_forward.1} parent=1 // loop_footer
      %s26 = sadd.s32 1, %s22
    $region7: #{transformer_forward.1} parent=1 // loop_footer_branch
      %21 = sbr.rel target = $region3
    $region8: #{transformer_forward.1} parent=1 // loop_exit
      _
    %2374 = vsyncpa [#allocation4], 1
    %s2375 = scalar_lea.sflag [#allocation4], 1
    %2376 = vsyncpa %s2375, 1

</llo_original>
